<compile_context>
chip_gen: v5e
topology: v5e:2x2
jax: 0.10.0
libtpu: 0.0.40
codegen_flags: <defaults>
</compile_context>

<pallas_src>
import functools

import jax
import jax.numpy as jnp
from jax import lax
from jax.experimental import pallas as pl
from jax.experimental.pallas import tpu as pltpu


def _stock_lstm_kernel(
    x_ref,      # (T*B, F_pad)  bf16, time-major, batch padded to B
    wih0_ref,   # (F_pad, 4H)   bf16, g-cols pre-scaled by 2
    b0_ref,     # (1, 4H)       f32,  b_ih0 + b_hh0, g-cols pre-scaled by 2
    wf_ref,     # (H, 8H)       bf16, [whh0 | wih1], g-cols pre-scaled by 2
    whh1_ref,   # (H, 4H)       bf16, g-cols pre-scaled by 2
    b1_ref,     # (1, 4H)       f32,  b_ih1 + b_hh1, g-cols pre-scaled by 2
    wfc_ref,    # (H, O_pad)    bf16
    bfc_ref,    # (1, O_pad)    f32
    out_ref,    # (B, O_pad)    f32
    xp_ref,     # VMEM scratch (T*B, 4H) f32
    *,
    seq_len: int,
    batch: int,
    hidden_size: int,
):
    T, B, H = seq_len, batch, hidden_size

    # Hoisted, non-recurrent layer-0 input projection for ALL timesteps: one bf16 (T*B, F)x(F, 4H)
    # MXU pass (f32 accum).  Stored to VMEM scratch and re-loaded per step so the full (T*B, 4H)
    # value is never live across the recurrence.
    xp_ref[...] = (
        jnp.dot(x_ref[...], wih0_ref[...], preferred_element_type=jnp.float32)
        + b0_ref[...]
    )

    wf = wf_ref[...]
    whh1 = whh1_ref[...]
    # Hoist the bias broadcast out of the loop (JAX does not CSE broadcast_in_dim per-iteration).
    b1 = jnp.broadcast_to(b1_ref[...], (B, 4 * H))

    def activate(gates, c_prev):
        # ONE full-width EUP pass per cell.  g-gate pre-activations were pre-scaled by 2
        # wrapper-side, so tanh(x) = 2*sigmoid(2x) - 1 is recovered with a VPU fma.
        # PyTorch gate order (i, f, g, o).  All elementwise math stays f32 (v5e-safe).
        sg = jax.nn.sigmoid(gates)
        i = sg[:, 0 * H:1 * H]
        f = sg[:, 1 * H:2 * H]
        g = 2.0 * sg[:, 2 * H:3 * H] - 1.0
        o = sg[:, 3 * H:4 * H]
        c_new = f * c_prev + i * g
        h_new = o * jnp.tanh(c_new)
        return h_new, c_new

    c0 = jnp.zeros((B, H), jnp.float32)
    h1 = jnp.zeros((B, H), jnp.float32)
    c1 = jnp.zeros((B, H), jnp.float32)
    # rec0(t) = h0(t-1) @ whh0 is carried across steps (computed as part of the fused push below);
    # h0 init is zero so it starts at zero and h0 itself never needs to be carried.
    rec0 = jnp.zeros((B, 4 * H), jnp.float32)

    # Fully-unrolled recurrence (T is small & static): static, sublane-aligned slices of xp_ref.
    # TODO(synk): for large T, switch to lax.fori_loop(..., unroll=<small>) with
    # pl.ds(pl.multiple_of(t * B, B), B) slices to bound live ranges / code size.
    for t in range(T):
        # Layer-1 recurrent term depends only on h1(t-1): independent of this step's act0, so the
        # scheduler can issue this MXU push off the serial chain.
        rec1 = jnp.dot(h1.astype(jnp.bfloat16), whh1,
                       preferred_element_type=jnp.float32)

        # Layer 0: rec0 was already produced by the previous step's fused push.
        g0 = xp_ref[t * B:(t + 1) * B, :] + rec0
        h0, c0 = activate(g0, c0)

        # Single serial MXU push: h0 @ [whh0 | wih1] gives next step's layer-0 recurrent term AND
        # this step's layer-1 input term (no concat, no second serialized dot).
        fused = jnp.dot(h0.astype(jnp.bfloat16), wf,
                        preferred_element_type=jnp.float32)   # (B, 8H)
        rec0 = fused[:, :4 * H]
        g1 = fused[:, 4 * H:] + rec1 + b1
        h1, c1 = activate(g1, c1)

    # fc(dropout(out[:, -1])): dropout is identity in eval mode.  (B, O_pad) lane-dense store.
    out_ref[...] = (
        jnp.dot(h1.astype(jnp.bfloat16), wfc_ref[...],
                preferred_element_type=jnp.float32)
        + bfc_ref[...]
    ).astype(out_ref.dtype)


def _round_up(n, m):
    return (n + m - 1) // m * m


def stock_lstm_forward(x, params):
    """x: (B, T, F) float32 -> (B, output_size) float32."""
    B, T, F = x.shape
    H = params["whh0"].shape[0]
    O = params["wfc"].shape[1]

    B_pad = _round_up(B, 8)      # fill sublanes
    F_pad = _round_up(F, 8)      # tile-aligned contraction dim for the one-off input matmul
    O_pad = _round_up(O, 128)    # lane-dense final store

    # --- Wrapper-side layout plumbing (no compute hoisted out of the kernel) ---
    x_p = x
    if B_pad != B:
        x_p = jnp.pad(x_p, ((0, B_pad - B), (0, 0), (0, 0)))
    if F_pad != F:
        x_p = jnp.pad(x_p, ((0, 0), (0, 0), (0, F_pad - F)))
    # Time-major, flattened so each timestep is a tile-aligned block of B_pad rows.
    x_tm = jnp.transpose(x_p, (1, 0, 2)).reshape(T * B_pad, F_pad).astype(jnp.bfloat16)

    def scale_g(w):
        # Pre-scale the g-gate pre-activation columns by 2 so the kernel can use a single
        # sigmoid pass per cell (tanh(x) = 2*sigmoid(2x) - 1).
        return jnp.concatenate(
            [w[..., :2 * H], 2.0 * w[..., 2 * H:3 * H], w[..., 3 * H:]], axis=-1)

    wih0 = scale_g(params["wih0"])
    whh0 = scale_g(params["whh0"])
    b0 = scale_g(params["b0"])
    wih1 = scale_g(params["wih1"])
    whh1 = scale_g(params["whh1"])
    b1 = scale_g(params["b1"])

    if F_pad != F:
        wih0 = jnp.pad(wih0, ((0, F_pad - F), (0, 0)))   # zero rows: no effect on x @ wih0

    # Fuse [whh0 | wih1] so the serial chain is ONE MXU push per timestep.
    wf = jnp.concatenate([whh0, wih1], axis=1)           # (H, 8H)

    wfc, bfc = params["wfc"], params["bfc"]
    if O_pad != O:
        wfc = jnp.pad(wfc, ((0, 0), (0, O_pad - O)))
        bfc = jnp.pad(bfc, ((0, 0), (0, O_pad - O)))

    bf16 = lambda a: a.astype(jnp.bfloat16)
    f32 = lambda a: a.astype(jnp.float32)

    kernel = functools.partial(
        _stock_lstm_kernel, seq_len=T, batch=B_pad, hidden_size=H)

    out = pl.pallas_call(
        kernel,
        out_shape=jax.ShapeDtypeStruct((B_pad, O_pad), jnp.float32),
        # Single invocation (no grid): everything is tiny and resident in VMEM once, so constant
        # weights are not double-buffered across any grid axis.
        in_specs=[pl.BlockSpec(memory_space=pltpu.MemorySpace.VMEM) for _ in range(8)],
        out_specs=pl.BlockSpec(memory_space=pltpu.MemorySpace.VMEM),
        scratch_shapes=[pltpu.VMEM((T * B_pad, 4 * H), jnp.float32)],
        # TODO(synk): at realistic hidden sizes on v7x (64 MiB VMEM) set
        # pltpu.CompilerParams(vmem_limit_bytes=...) and/or tile the 4H gate dim with a grid axis;
        # for large deployed batches add a "parallel" batch grid axis so the 2nd v7x TensorCore
        # is used.  Pointless at these toy shapes.
    )(
        x_tm,
        bf16(wih0), f32(b0),
        bf16(wf),
        bf16(whh1), f32(b1),
        bf16(wfc), f32(bfc),
    )

    return out[:B, :O]


def init_params(key, input_size, hidden_size, output_size):
    """Deterministic init mimicking PyTorch's uniform(-1/sqrt(H), 1/sqrt(H))."""
    H, F, O = hidden_size, input_size, output_size
    k = 1.0 / jnp.sqrt(jnp.float32(H))
    keys = jax.random.split(key, 12)
    u = lambda kk, shape: jax.random.uniform(kk, shape, jnp.float32, -k, k)

    # Weights stored pre-transposed for `x @ W` layout inside the kernel.
    wih0 = u(keys[0], (F, 4 * H))
    whh0 = u(keys[1], (H, 4 * H))
    b0 = u(keys[2], (1, 4 * H)) + u(keys[3], (1, 4 * H))   # b_ih0 + b_hh0
    wih1 = u(keys[4], (H, 4 * H))
    whh1 = u(keys[5], (H, 4 * H))
    b1 = u(keys[6], (1, 4 * H)) + u(keys[7], (1, 4 * H))   # b_ih1 + b_hh1
    wfc = jax.random.uniform(keys[8], (H, O), jnp.float32, -k, k)
    bfc = jax.random.uniform(keys[9], (1, O), jnp.float32, -k, k)
    return dict(wih0=wih0, whh0=whh0, b0=b0, wih1=wih1, whh1=whh1, b1=b1,
                wfc=wfc, bfc=bfc)


def reference_forward(x, params):
    """Pure-JAX f32 reference of the same forward pass (for correctness check)."""
    B, T, F = x.shape
    H = params["whh0"].shape[0]

    def cell(x_t, h, c, wih, whh, b):
        g = x_t @ wih + h @ whh + b
        i = jax.nn.sigmoid(g[:, 0 * H:1 * H])
        f = jax.nn.sigmoid(g[:, 1 * H:2 * H])
        gg = jnp.tanh(g[:, 2 * H:3 * H])
        o = jax.nn.sigmoid(g[:, 3 * H:4 * H])
        c = f * c + i * gg
        h = o * jnp.tanh(c)
        return h, c

    h0 = c0 = h1 = c1 = jnp.zeros((B, H), jnp.float32)

    def step(carry, x_t):
        h0, c0, h1, c1 = carry
        h0, c0 = cell(x_t, h0, c0, params["wih0"], params["whh0"], params["b0"])
        h1, c1 = cell(h0, h1, c1, params["wih1"], params["whh1"], params["b1"])
        return (h0, c0, h1, c1), None

    (h0, c0, h1, c1), _ = lax.scan(step, (h0, c0, h1, c1),
                                   jnp.swapaxes(x, 0, 1))
    return h1 @ params["wfc"] + params["bfc"]


if __name__ == "__main__":
    # Small shapes consistent with StockLSTM: input_size=5, 2 layers, output_size=25.
    B, T, F, H, O = 4, 8, 5, 32, 25

    key = jax.random.PRNGKey(0)
    kx, kp = jax.random.split(key)
    x = jax.random.normal(kx, (B, T, F), jnp.float32)
    params = init_params(kp, F, H, O)

    out = stock_lstm_forward(x, params)
    out = jax.block_until_ready(out)

    ref = reference_forward(x, params)
    assert out.shape == (B, O)
    # bf16 MXU operands (f32 accumulation) => compare against the pure-f32 reference with a
    # correspondingly relaxed tolerance.
    max_err = float(jnp.max(jnp.abs(out - ref)))
    assert jnp.allclose(out, ref, atol=2e-2, rtol=2e-2), (
        f"mismatch vs JAX reference (max abs err {max_err:.3e})")

    print("KERNEL_OK")
</pallas_src>

<mosaic_0001>
module attributes {stable_mosaic.version = 11 : i64} {
  func.func @_stock_lstm_kernel(%arg0: memref<64x8xbf16, #tpu.memory_space<vmem>>, %arg1: memref<8x128xbf16, #tpu.memory_space<vmem>>, %arg2: memref<1x128xf32, #tpu.memory_space<vmem>>, %arg3: memref<32x256xbf16, #tpu.memory_space<vmem>>, %arg4: memref<32x128xbf16, #tpu.memory_space<vmem>>, %arg5: memref<1x128xf32, #tpu.memory_space<vmem>>, %arg6: memref<32x128xbf16, #tpu.memory_space<vmem>>, %arg7: memref<1x128xf32, #tpu.memory_space<vmem>>, %arg8: memref<8x128xf32, #tpu.memory_space<vmem>>, %arg9: memref<64x128xf32, #tpu.memory_space<vmem>>) attributes {dimension_semantics = [], scalar_prefetch = 0 : i64, scratch_operands = 1 : i64, tpu.core_type = #tpu.core_type<tc>} {
    %c0 = arith.constant 0 : index
    %c0_0 = arith.constant 0 : index
    %0 = vector.load %arg0[%c0, %c0_0] : memref<64x8xbf16, #tpu.memory_space<vmem>>, vector<64x8xbf16>
    %c0_1 = arith.constant 0 : index
    %c0_2 = arith.constant 0 : index
    %1 = vector.load %arg1[%c0_1, %c0_2] : memref<8x128xbf16, #tpu.memory_space<vmem>>, vector<8x128xbf16>
    %cst = arith.constant dense<0.000000e+00> : vector<64x128xf32>
    %2 = tpu.matmul %0, %1, %cst {dimension_numbers = #tpu.dot_dimension_numbers<[1], [0], [0], [1], [0, 0, 1, 1], [], []>} : vector<64x8xbf16>, vector<8x128xbf16>, vector<64x128xf32> -> vector<64x128xf32>
    %c0_3 = arith.constant 0 : index
    %c0_4 = arith.constant 0 : index
    %3 = vector.load %arg2[%c0_3, %c0_4] : memref<1x128xf32, #tpu.memory_space<vmem>>, vector<1x128xf32>
    %4 = vector.broadcast %3 : vector<1x128xf32> to vector<64x128xf32>
    %5 = arith.addf %2, %4 : vector<64x128xf32>
    %c0_5 = arith.constant 0 : index
    %c0_6 = arith.constant 0 : index
    %6 = vector.load %arg9[%c0_5, %c0_6] : memref<64x128xf32, #tpu.memory_space<vmem>>, vector<64x128xf32>
    tpu.vector_store %arg9[%c0_5, %c0_6], %5 {strides = array<i32>} : memref<64x128xf32, #tpu.memory_space<vmem>>, vector<64x128xf32>,
    %c0_7 = arith.constant 0 : index
    %c0_8 = arith.constant 0 : index
    %7 = vector.load %arg3[%c0_7, %c0_8] : memref<32x256xbf16, #tpu.memory_space<vmem>>, vector<32x256xbf16>
    %c0_9 = arith.constant 0 : index
    %c0_10 = arith.constant 0 : index
    %8 = vector.load %arg4[%c0_9, %c0_10] : memref<32x128xbf16, #tpu.memory_space<vmem>>, vector<32x128xbf16>
    %c0_11 = arith.constant 0 : index
    %c0_12 = arith.constant 0 : index
    %9 = vector.load %arg5[%c0_11, %c0_12] : memref<1x128xf32, #tpu.memory_space<vmem>>, vector<1x128xf32>
    %10 = vector.shape_cast %9 : vector<1x128xf32> to vector<1x128xf32>
    %11 = vector.broadcast %10 : vector<1x128xf32> to vector<8x128xf32>
    %cst_13 = arith.constant 0.000000e+00 : f32
    %12 = vector.broadcast %cst_13 : f32 to vector<8x32xf32>
    %cst_14 = arith.constant 0.000000e+00 : f32
    %13 = vector.broadcast %cst_14 : f32 to vector<8x32xf32>
    %cst_15 = arith.constant 0.000000e+00 : f32
    %14 = vector.broadcast %cst_15 : f32 to vector<8x32xf32>
    %cst_16 = arith.constant 0.000000e+00 : f32
    %15 = vector.broadcast %cst_16 : f32 to vector<8x128xf32>
    %16 = arith.truncf %13 : vector<8x32xf32> to vector<8x32xbf16>
    %cst_17 = arith.constant dense<0.000000e+00> : vector<8x128xf32>
    %17 = tpu.matmul %16, %8, %cst_17 {dimension_numbers = #tpu.dot_dimension_numbers<[1], [0], [0], [1], [0, 0, 1, 1], [], []>} : vector<8x32xbf16>, vector<32x128xbf16>, vector<8x128xf32> -> vector<8x128xf32>
    %c0_18 = arith.constant 0 : index
    %c0_19 = arith.constant 0 : index
    %18 = vector.load %arg9[%c0_18, %c0_19] : memref<64x128xf32, #tpu.memory_space<vmem>>, vector<8x128xf32>
    %19 = arith.addf %18, %15 : vector<8x128xf32>
    %20 = arith.negf %19 : vector<8x128xf32>
    %21 = math.exp %20 : vector<8x128xf32>
    %cst_20 = arith.constant 1.000000e+00 : f32
    %22 = vector.broadcast %cst_20 : f32 to vector<8x128xf32>
    %23 = arith.addf %22, %21 : vector<8x128xf32>
    %24 = arith.divf %22, %23 : vector<8x128xf32>
    %25 = vector.extract_strided_slice %24 {offsets = [0, 0], sizes = [8, 32], strides = [1, 1]} : vector<8x128xf32> to vector<8x32xf32>
    %26 = vector.extract_strided_slice %24 {offsets = [0, 32], sizes = [8, 32], strides = [1, 1]} : vector<8x128xf32> to vector<8x32xf32>
    %27 = vector.extract_strided_slice %24 {offsets = [0, 64], sizes = [8, 32], strides = [1, 1]} : vector<8x128xf32> to vector<8x32xf32>
    %cst_21 = arith.constant 2.000000e+00 : f32
    %28 = vector.broadcast %cst_21 : f32 to vector<8x32xf32>
    %29 = arith.mulf %28, %27 : vector<8x32xf32>
    %cst_22 = arith.constant 1.000000e+00 : f32
    %30 = vector.broadcast %cst_22 : f32 to vector<8x32xf32>
    %31 = arith.subf %29, %30 : vector<8x32xf32>
    %32 = vector.extract_strided_slice %24 {offsets = [0, 96], sizes = [8, 32], strides = [1, 1]} : vector<8x128xf32> to vector<8x32xf32>
    %33 = arith.mulf %26, %12 : vector<8x32xf32>
    %34 = arith.mulf %25, %31 : vector<8x32xf32>
    %35 = arith.addf %33, %34 : vector<8x32xf32>
    %36 = math.tanh %35 : vector<8x32xf32>
    %37 = arith.mulf %32, %36 : vector<8x32xf32>
    %38 = arith.truncf %37 : vector<8x32xf32> to vector<8x32xbf16>
    %cst_23 = arith.constant dense<0.000000e+00> : vector<8x256xf32>
    %39 = tpu.matmul %38, %7, %cst_23 {dimension_numbers = #tpu.dot_dimension_numbers<[1], [0], [0], [1], [0, 0, 1, 1], [], []>} : vector<8x32xbf16>, vector<32x256xbf16>, vector<8x256xf32> -> vector<8x256xf32>
    %40 = vector.extract_strided_slice %39 {offsets = [0, 0], sizes = [8, 128], strides = [1, 1]} : vector<8x256xf32> to vector<8x128xf32>
    %41 = vector.extract_strided_slice %39 {offsets = [0, 128], sizes = [8, 128], strides = [1, 1]} : vector<8x256xf32> to vector<8x128xf32>
    %42 = arith.addf %41, %17 : vector<8x128xf32>
    %43 = arith.addf %42, %11 : vector<8x128xf32>
    %44 = arith.negf %43 : vector<8x128xf32>
    %45 = math.exp %44 : vector<8x128xf32>
    %cst_24 = arith.constant 1.000000e+00 : f32
    %46 = vector.broadcast %cst_24 : f32 to vector<8x128xf32>
    %47 = arith.addf %46, %45 : vector<8x128xf32>
    %48 = arith.divf %46, %47 : vector<8x128xf32>
    %49 = vector.extract_strided_slice %48 {offsets = [0, 0], sizes = [8, 32], strides = [1, 1]} : vector<8x128xf32> to vector<8x32xf32>
    %50 = vector.extract_strided_slice %48 {offsets = [0, 32], sizes = [8, 32], strides = [1, 1]} : vector<8x128xf32> to vector<8x32xf32>
    %51 = vector.extract_strided_slice %48 {offsets = [0, 64], sizes = [8, 32], strides = [1, 1]} : vector<8x128xf32> to vector<8x32xf32>
    %cst_25 = arith.constant 2.000000e+00 : f32
    %52 = vector.broadcast %cst_25 : f32 to vector<8x32xf32>
    %53 = arith.mulf %52, %51 : vector<8x32xf32>
    %cst_26 = arith.constant 1.000000e+00 : f32
    %54 = vector.broadcast %cst_26 : f32 to vector<8x32xf32>
    %55 = arith.subf %53, %54 : vector<8x32xf32>
    %56 = vector.extract_strided_slice %48 {offsets = [0, 96], sizes = [8, 32], strides = [1, 1]} : vector<8x128xf32> to vector<8x32xf32>
    %57 = arith.mulf %50, %14 : vector<8x32xf32>
    %58 = arith.mulf %49, %55 : vector<8x32xf32>
    %59 = arith.addf %57, %58 : vector<8x32xf32>
    %60 = math.tanh %59 : vector<8x32xf32>
    %61 = arith.mulf %56, %60 : vector<8x32xf32>
    %62 = arith.truncf %61 : vector<8x32xf32> to vector<8x32xbf16>
    %cst_27 = arith.constant dense<0.000000e+00> : vector<8x128xf32>
    %63 = tpu.matmul %62, %8, %cst_27 {dimension_numbers = #tpu.dot_dimension_numbers<[1], [0], [0], [1], [0, 0, 1, 1], [], []>} : vector<8x32xbf16>, vector<32x128xbf16>, vector<8x128xf32> -> vector<8x128xf32>
    %c8 = arith.constant 8 : index
    %c0_28 = arith.constant 0 : index
    %64 = vector.load %arg9[%c8, %c0_28] : memref<64x128xf32, #tpu.memory_space<vmem>>, vector<8x128xf32>
    %65 = arith.addf %64, %40 : vector<8x128xf32>
    %66 = arith.negf %65 : vector<8x128xf32>
    %67 = math.exp %66 : vector<8x128xf32>
    %cst_29 = arith.constant 1.000000e+00 : f32
    %68 = vector.broadcast %cst_29 : f32 to vector<8x128xf32>
    %69 = arith.addf %68, %67 : vector<8x128xf32>
    %70 = arith.divf %68, %69 : vector<8x128xf32>
    %71 = vector.extract_strided_slice %70 {offsets = [0, 0], sizes = [8, 32], strides = [1, 1]} : vector<8x128xf32> to vector<8x32xf32>
    %72 = vector.extract_strided_slice %70 {offsets = [0, 32], sizes = [8, 32], strides = [1, 1]} : vector<8x128xf32> to vector<8x32xf32>
    %73 = vector.extract_strided_slice %70 {offsets = [0, 64], sizes = [8, 32], strides = [1, 1]} : vector<8x128xf32> to vector<8x32xf32>
    %cst_30 = arith.constant 2.000000e+00 : f32
    %74 = vector.broadcast %cst_30 : f32 to vector<8x32xf32>
    %75 = arith.mulf %74, %73 : vector<8x32xf32>
    %cst_31 = arith.constant 1.000000e+00 : f32
    %76 = vector.broadcast %cst_31 : f32 to vector<8x32xf32>
    %77 = arith.subf %75, %76 : vector<8x32xf32>
    %78 = vector.extract_strided_slice %70 {offsets = [0, 96], sizes = [8, 32], strides = [1, 1]} : vector<8x128xf32> to vector<8x32xf32>
    %79 = arith.mulf %72, %35 : vector<8x32xf32>
    %80 = arith.mulf %71, %77 : vector<8x32xf32>
    %81 = arith.addf %79, %80 : vector<8x32xf32>
    %82 = math.tanh %81 : vector<8x32xf32>
    %83 = arith.mulf %78, %82 : vector<8x32xf32>
    %84 = arith.truncf %83 : vector<8x32xf32> to vector<8x32xbf16>
    %cst_32 = arith.constant dense<0.000000e+00> : vector<8x256xf32>
    %85 = tpu.matmul %84, %7, %cst_32 {dimension_numbers = #tpu.dot_dimension_numbers<[1], [0], [0], [1], [0, 0, 1, 1], [], []>} : vector<8x32xbf16>, vector<32x256xbf16>, vector<8x256xf32> -> vector<8x256xf32>
    %86 = vector.extract_strided_slice %85 {offsets = [0, 0], sizes = [8, 128], strides = [1, 1]} : vector<8x256xf32> to vector<8x128xf32>
    %87 = vector.extract_strided_slice %85 {offsets = [0, 128], sizes = [8, 128], strides = [1, 1]} : vector<8x256xf32> to vector<8x128xf32>
    %88 = arith.addf %87, %63 : vector<8x128xf32>
    %89 = arith.addf %88, %11 : vector<8x128xf32>
    %90 = arith.negf %89 : vector<8x128xf32>
    %91 = math.exp %90 : vector<8x128xf32>
    %cst_33 = arith.constant 1.000000e+00 : f32
    %92 = vector.broadcast %cst_33 : f32 to vector<8x128xf32>
    %93 = arith.addf %92, %91 : vector<8x128xf32>
    %94 = arith.divf %92, %93 : vector<8x128xf32>
    %95 = vector.extract_strided_slice %94 {offsets = [0, 0], sizes = [8, 32], strides = [1, 1]} : vector<8x128xf32> to vector<8x32xf32>
    %96 = vector.extract_strided_slice %94 {offsets = [0, 32], sizes = [8, 32], strides = [1, 1]} : vector<8x128xf32> to vector<8x32xf32>
    %97 = vector.extract_strided_slice %94 {offsets = [0, 64], sizes = [8, 32], strides = [1, 1]} : vector<8x128xf32> to vector<8x32xf32>
    %cst_34 = arith.constant 2.000000e+00 : f32
    %98 = vector.broadcast %cst_34 : f32 to vector<8x32xf32>
    %99 = arith.mulf %98, %97 : vector<8x32xf32>
    %cst_35 = arith.constant 1.000000e+00 : f32
    %100 = vector.broadcast %cst_35 : f32 to vector<8x32xf32>
    %101 = arith.subf %99, %100 : vector<8x32xf32>
    %102 = vector.extract_strided_slice %94 {offsets = [0, 96], sizes = [8, 32], strides = [1, 1]} : vector<8x128xf32> to vector<8x32xf32>
    %103 = arith.mulf %96, %59 : vector<8x32xf32>
    %104 = arith.mulf %95, %101 : vector<8x32xf32>
    %105 = arith.addf %103, %104 : vector<8x32xf32>
    %106 = math.tanh %105 : vector<8x32xf32>
    %107 = arith.mulf %102, %106 : vector<8x32xf32>
    %108 = arith.truncf %107 : vector<8x32xf32> to vector<8x32xbf16>
    %cst_36 = arith.constant dense<0.000000e+00> : vector<8x128xf32>
    %109 = tpu.matmul %108, %8, %cst_36 {dimension_numbers = #tpu.dot_dimension_numbers<[1], [0], [0], [1], [0, 0, 1, 1], [], []>} : vector<8x32xbf16>, vector<32x128xbf16>, vector<8x128xf32> -> vector<8x128xf32>
    %c16 = arith.constant 16 : index
    %c0_37 = arith.constant 0 : index
    %110 = vector.load %arg9[%c16, %c0_37] : memref<64x128xf32, #tpu.memory_space<vmem>>, vector<8x128xf32>
    %111 = arith.addf %110, %86 : vector<8x128xf32>
    %112 = arith.negf %111 : vector<8x128xf32>
    %113 = math.exp %112 : vector<8x128xf32>
    %cst_38 = arith.constant 1.000000e+00 : f32
    %114 = vector.broadcast %cst_38 : f32 to vector<8x128xf32>
    %115 = arith.addf %114, %113 : vector<8x128xf32>
    %116 = arith.divf %114, %115 : vector<8x128xf32>
    %117 = vector.extract_strided_slice %116 {offsets = [0, 0], sizes = [8, 32], strides = [1, 1]} : vector<8x128xf32> to vector<8x32xf32>
    %118 = vector.extract_strided_slice %116 {offsets = [0, 32], sizes = [8, 32], strides = [1, 1]} : vector<8x128xf32> to vector<8x32xf32>
    %119 = vector.extract_strided_slice %116 {offsets = [0, 64], sizes = [8, 32], strides = [1, 1]} : vector<8x128xf32> to vector<8x32xf32>
    %cst_39 = arith.constant 2.000000e+00 : f32
    %120 = vector.broadcast %cst_39 : f32 to vector<8x32xf32>
    %121 = arith.mulf %120, %119 : vector<8x32xf32>
    %cst_40 = arith.constant 1.000000e+00 : f32
    %122 = vector.broadcast %cst_40 : f32 to vector<8x32xf32>
    %123 = arith.subf %121, %122 : vector<8x32xf32>
    %124 = vector.extract_strided_slice %116 {offsets = [0, 96], sizes = [8, 32], strides = [1, 1]} : vector<8x128xf32> to vector<8x32xf32>
    %125 = arith.mulf %118, %81 : vector<8x32xf32>
    %126 = arith.mulf %117, %123 : vector<8x32xf32>
    %127 = arith.addf %125, %126 : vector<8x32xf32>
    %128 = math.tanh %127 : vector<8x32xf32>
    %129 = arith.mulf %124, %128 : vector<8x32xf32>
    %130 = arith.truncf %129 : vector<8x32xf32> to vector<8x32xbf16>
    %cst_41 = arith.constant dense<0.000000e+00> : vector<8x256xf32>
    %131 = tpu.matmul %130, %7, %cst_41 {dimension_numbers = #tpu.dot_dimension_numbers<[1], [0], [0], [1], [0, 0, 1, 1], [], []>} : vector<8x32xbf16>, vector<32x256xbf16>, vector<8x256xf32> -> vector<8x256xf32>
    %132 = vector.extract_strided_slice %131 {offsets = [0, 0], sizes = [8, 128], strides = [1, 1]} : vector<8x256xf32> to vector<8x128xf32>
    %133 = vector.extract_strided_slice %131 {offsets = [0, 128], sizes = [8, 128], strides = [1, 1]} : vector<8x256xf32> to vector<8x128xf32>
    %134 = arith.addf %133, %109 : vector<8x128xf32>
    %135 = arith.addf %134, %11 : vector<8x128xf32>
    %136 = arith.negf %135 : vector<8x128xf32>
    %137 = math.exp %136 : vector<8x128xf32>
    %cst_42 = arith.constant 1.000000e+00 : f32
    %138 = vector.broadcast %cst_42 : f32 to vector<8x128xf32>
    %139 = arith.addf %138, %137 : vector<8x128xf32>
    %140 = arith.divf %138, %139 : vector<8x128xf32>
    %141 = vector.extract_strided_slice %140 {offsets = [0, 0], sizes = [8, 32], strides = [1, 1]} : vector<8x128xf32> to vector<8x32xf32>
    %142 = vector.extract_strided_slice %140 {offsets = [0, 32], sizes = [8, 32], strides = [1, 1]} : vector<8x128xf32> to vector<8x32xf32>
    %143 = vector.extract_strided_slice %140 {offsets = [0, 64], sizes = [8, 32], strides = [1, 1]} : vector<8x128xf32> to vector<8x32xf32>
    %cst_43 = arith.constant 2.000000e+00 : f32
    %144 = vector.broadcast %cst_43 : f32 to vector<8x32xf32>
    %145 = arith.mulf %144, %143 : vector<8x32xf32>
    %cst_44 = arith.constant 1.000000e+00 : f32
    %146 = vector.broadcast %cst_44 : f32 to vector<8x32xf32>
    %147 = arith.subf %145, %146 : vector<8x32xf32>
    %148 = vector.extract_strided_slice %140 {offsets = [0, 96], sizes = [8, 32], strides = [1, 1]} : vector<8x128xf32> to vector<8x32xf32>
    %149 = arith.mulf %142, %105 : vector<8x32xf32>
    %150 = arith.mulf %141, %147 : vector<8x32xf32>
    %151 = arith.addf %149, %150 : vector<8x32xf32>
    %152 = math.tanh %151 : vector<8x32xf32>
    %153 = arith.mulf %148, %152 : vector<8x32xf32>
    %154 = arith.truncf %153 : vector<8x32xf32> to vector<8x32xbf16>
    %cst_45 = arith.constant dense<0.000000e+00> : vector<8x128xf32>
    %155 = tpu.matmul %154, %8, %cst_45 {dimension_numbers = #tpu.dot_dimension_numbers<[1], [0], [0], [1], [0, 0, 1, 1], [], []>} : vector<8x32xbf16>, vector<32x128xbf16>, vector<8x128xf32> -> vector<8x128xf32>
    %c24 = arith.constant 24 : index
    %c0_46 = arith.constant 0 : index
    %156 = vector.load %arg9[%c24, %c0_46] : memref<64x128xf32, #tpu.memory_space<vmem>>, vector<8x128xf32>
    %157 = arith.addf %156, %132 : vector<8x128xf32>
    %158 = arith.negf %157 : vector<8x128xf32>
    %159 = math.exp %158 : vector<8x128xf32>
    %cst_47 = arith.constant 1.000000e+00 : f32
    %160 = vector.broadcast %cst_47 : f32 to vector<8x128xf32>
    %161 = arith.addf %160, %159 : vector<8x128xf32>
    %162 = arith.divf %160, %161 : vector<8x128xf32>
    %163 = vector.extract_strided_slice %162 {offsets = [0, 0], sizes = [8, 32], strides = [1, 1]} : vector<8x128xf32> to vector<8x32xf32>
    %164 = vector.extract_strided_slice %162 {offsets = [0, 32], sizes = [8, 32], strides = [1, 1]} : vector<8x128xf32> to vector<8x32xf32>
    %165 = vector.extract_strided_slice %162 {offsets = [0, 64], sizes = [8, 32], strides = [1, 1]} : vector<8x128xf32> to vector<8x32xf32>
    %cst_48 = arith.constant 2.000000e+00 : f32
    %166 = vector.broadcast %cst_48 : f32 to vector<8x32xf32>
    %167 = arith.mulf %166, %165 : vector<8x32xf32>
    %cst_49 = arith.constant 1.000000e+00 : f32
    %168 = vector.broadcast %cst_49 : f32 to vector<8x32xf32>
    %169 = arith.subf %167, %168 : vector<8x32xf32>
    %170 = vector.extract_strided_slice %162 {offsets = [0, 96], sizes = [8, 32], strides = [1, 1]} : vector<8x128xf32> to vector<8x32xf32>
    %171 = arith.mulf %164, %127 : vector<8x32xf32>
    %172 = arith.mulf %163, %169 : vector<8x32xf32>
    %173 = arith.addf %171, %172 : vector<8x32xf32>
    %174 = math.tanh %173 : vector<8x32xf32>
    %175 = arith.mulf %170, %174 : vector<8x32xf32>
    %176 = arith.truncf %175 : vector<8x32xf32> to vector<8x32xbf16>
    %cst_50 = arith.constant dense<0.000000e+00> : vector<8x256xf32>
    %177 = tpu.matmul %176, %7, %cst_50 {dimension_numbers = #tpu.dot_dimension_numbers<[1], [0], [0], [1], [0, 0, 1, 1], [], []>} : vector<8x32xbf16>, vector<32x256xbf16>, vector<8x256xf32> -> vector<8x256xf32>
    %178 = vector.extract_strided_slice %177 {offsets = [0, 0], sizes = [8, 128], strides = [1, 1]} : vector<8x256xf32> to vector<8x128xf32>
    %179 = vector.extract_strided_slice %177 {offsets = [0, 128], sizes = [8, 128], strides = [1, 1]} : vector<8x256xf32> to vector<8x128xf32>
    %180 = arith.addf %179, %155 : vector<8x128xf32>
    %181 = arith.addf %180, %11 : vector<8x128xf32>
    %182 = arith.negf %181 : vector<8x128xf32>
    %183 = math.exp %182 : vector<8x128xf32>
    %cst_51 = arith.constant 1.000000e+00 : f32
    %184 = vector.broadcast %cst_51 : f32 to vector<8x128xf32>
    %185 = arith.addf %184, %183 : vector<8x128xf32>
    %186 = arith.divf %184, %185 : vector<8x128xf32>
    %187 = vector.extract_strided_slice %186 {offsets = [0, 0], sizes = [8, 32], strides = [1, 1]} : vector<8x128xf32> to vector<8x32xf32>
    %188 = vector.extract_strided_slice %186 {offsets = [0, 32], sizes = [8, 32], strides = [1, 1]} : vector<8x128xf32> to vector<8x32xf32>
    %189 = vector.extract_strided_slice %186 {offsets = [0, 64], sizes = [8, 32], strides = [1, 1]} : vector<8x128xf32> to vector<8x32xf32>
    %cst_52 = arith.constant 2.000000e+00 : f32
    %190 = vector.broadcast %cst_52 : f32 to vector<8x32xf32>
    %191 = arith.mulf %190, %189 : vector<8x32xf32>
    %cst_53 = arith.constant 1.000000e+00 : f32
    %192 = vector.broadcast %cst_53 : f32 to vector<8x32xf32>
    %193 = arith.subf %191, %192 : vector<8x32xf32>
    %194 = vector.extract_strided_slice %186 {offsets = [0, 96], sizes = [8, 32], strides = [1, 1]} : vector<8x128xf32> to vector<8x32xf32>
    %195 = arith.mulf %188, %151 : vector<8x32xf32>
    %196 = arith.mulf %187, %193 : vector<8x32xf32>
    %197 = arith.addf %195, %196 : vector<8x32xf32>
    %198 = math.tanh %197 : vector<8x32xf32>
    %199 = arith.mulf %194, %198 : vector<8x32xf32>
    %200 = arith.truncf %199 : vector<8x32xf32> to vector<8x32xbf16>
    %cst_54 = arith.constant dense<0.000000e+00> : vector<8x128xf32>
    %201 = tpu.matmul %200, %8, %cst_54 {dimension_numbers = #tpu.dot_dimension_numbers<[1], [0], [0], [1], [0, 0, 1, 1], [], []>} : vector<8x32xbf16>, vector<32x128xbf16>, vector<8x128xf32> -> vector<8x128xf32>
    %c32 = arith.constant 32 : index
    %c0_55 = arith.constant 0 : index
    %202 = vector.load %arg9[%c32, %c0_55] : memref<64x128xf32, #tpu.memory_space<vmem>>, vector<8x128xf32>
    %203 = arith.addf %202, %178 : vector<8x128xf32>
    %204 = arith.negf %203 : vector<8x128xf32>
    %205 = math.exp %204 : vector<8x128xf32>
    %cst_56 = arith.constant 1.000000e+00 : f32
    %206 = vector.broadcast %cst_56 : f32 to vector<8x128xf32>
    %207 = arith.addf %206, %205 : vector<8x128xf32>
    %208 = arith.divf %206, %207 : vector<8x128xf32>
    %209 = vector.extract_strided_slice %208 {offsets = [0, 0], sizes = [8, 32], strides = [1, 1]} : vector<8x128xf32> to vector<8x32xf32>
    %210 = vector.extract_strided_slice %208 {offsets = [0, 32], sizes = [8, 32], strides = [1, 1]} : vector<8x128xf32> to vector<8x32xf32>
    %211 = vector.extract_strided_slice %208 {offsets = [0, 64], sizes = [8, 32], strides = [1, 1]} : vector<8x128xf32> to vector<8x32xf32>
    %cst_57 = arith.constant 2.000000e+00 : f32
    %212 = vector.broadcast %cst_57 : f32 to vector<8x32xf32>
    %213 = arith.mulf %212, %211 : vector<8x32xf32>
    %cst_58 = arith.constant 1.000000e+00 : f32
    %214 = vector.broadcast %cst_58 : f32 to vector<8x32xf32>
    %215 = arith.subf %213, %214 : vector<8x32xf32>
    %216 = vector.extract_strided_slice %208 {offsets = [0, 96], sizes = [8, 32], strides = [1, 1]} : vector<8x128xf32> to vector<8x32xf32>
    %217 = arith.mulf %210, %173 : vector<8x32xf32>
    %218 = arith.mulf %209, %215 : vector<8x32xf32>
    %219 = arith.addf %217, %218 : vector<8x32xf32>
    %220 = math.tanh %219 : vector<8x32xf32>
    %221 = arith.mulf %216, %220 : vector<8x32xf32>
    %222 = arith.truncf %221 : vector<8x32xf32> to vector<8x32xbf16>
    %cst_59 = arith.constant dense<0.000000e+00> : vector<8x256xf32>
    %223 = tpu.matmul %222, %7, %cst_59 {dimension_numbers = #tpu.dot_dimension_numbers<[1], [0], [0], [1], [0, 0, 1, 1], [], []>} : vector<8x32xbf16>, vector<32x256xbf16>, vector<8x256xf32> -> vector<8x256xf32>
    %224 = vector.extract_strided_slice %223 {offsets = [0, 0], sizes = [8, 128], strides = [1, 1]} : vector<8x256xf32> to vector<8x128xf32>
    %225 = vector.extract_strided_slice %223 {offsets = [0, 128], sizes = [8, 128], strides = [1, 1]} : vector<8x256xf32> to vector<8x128xf32>
    %226 = arith.addf %225, %201 : vector<8x128xf32>
    %227 = arith.addf %226, %11 : vector<8x128xf32>
    %228 = arith.negf %227 : vector<8x128xf32>
    %229 = math.exp %228 : vector<8x128xf32>
    %cst_60 = arith.constant 1.000000e+00 : f32
    %230 = vector.broadcast %cst_60 : f32 to vector<8x128xf32>
    %231 = arith.addf %230, %229 : vector<8x128xf32>
    %232 = arith.divf %230, %231 : vector<8x128xf32>
    %233 = vector.extract_strided_slice %232 {offsets = [0, 0], sizes = [8, 32], strides = [1, 1]} : vector<8x128xf32> to vector<8x32xf32>
    %234 = vector.extract_strided_slice %232 {offsets = [0, 32], sizes = [8, 32], strides = [1, 1]} : vector<8x128xf32> to vector<8x32xf32>
    %235 = vector.extract_strided_slice %232 {offsets = [0, 64], sizes = [8, 32], strides = [1, 1]} : vector<8x128xf32> to vector<8x32xf32>
    %cst_61 = arith.constant 2.000000e+00 : f32
    %236 = vector.broadcast %cst_61 : f32 to vector<8x32xf32>
    %237 = arith.mulf %236, %235 : vector<8x32xf32>
    %cst_62 = arith.constant 1.000000e+00 : f32
    %238 = vector.broadcast %cst_62 : f32 to vector<8x32xf32>
    %239 = arith.subf %237, %238 : vector<8x32xf32>
    %240 = vector.extract_strided_slice %232 {offsets = [0, 96], sizes = [8, 32], strides = [1, 1]} : vector<8x128xf32> to vector<8x32xf32>
    %241 = arith.mulf %234, %197 : vector<8x32xf32>
    %242 = arith.mulf %233, %239 : vector<8x32xf32>
    %243 = arith.addf %241, %242 : vector<8x32xf32>
    %244 = math.tanh %243 : vector<8x32xf32>
    %245 = arith.mulf %240, %244 : vector<8x32xf32>
    %246 = arith.truncf %245 : vector<8x32xf32> to vector<8x32xbf16>
    %cst_63 = arith.constant dense<0.000000e+00> : vector<8x128xf32>
    %247 = tpu.matmul %246, %8, %cst_63 {dimension_numbers = #tpu.dot_dimension_numbers<[1], [0], [0], [1], [0, 0, 1, 1], [], []>} : vector<8x32xbf16>, vector<32x128xbf16>, vector<8x128xf32> -> vector<8x128xf32>
    %c40 = arith.constant 40 : index
    %c0_64 = arith.constant 0 : index
    %248 = vector.load %arg9[%c40, %c0_64] : memref<64x128xf32, #tpu.memory_space<vmem>>, vector<8x128xf32>
    %249 = arith.addf %248, %224 : vector<8x128xf32>
    %250 = arith.negf %249 : vector<8x128xf32>
    %251 = math.exp %250 : vector<8x128xf32>
    %cst_65 = arith.constant 1.000000e+00 : f32
    %252 = vector.broadcast %cst_65 : f32 to vector<8x128xf32>
    %253 = arith.addf %252, %251 : vector<8x128xf32>
    %254 = arith.divf %252, %253 : vector<8x128xf32>
    %255 = vector.extract_strided_slice %254 {offsets = [0, 0], sizes = [8, 32], strides = [1, 1]} : vector<8x128xf32> to vector<8x32xf32>
    %256 = vector.extract_strided_slice %254 {offsets = [0, 32], sizes = [8, 32], strides = [1, 1]} : vector<8x128xf32> to vector<8x32xf32>
    %257 = vector.extract_strided_slice %254 {offsets = [0, 64], sizes = [8, 32], strides = [1, 1]} : vector<8x128xf32> to vector<8x32xf32>
    %cst_66 = arith.constant 2.000000e+00 : f32
    %258 = vector.broadcast %cst_66 : f32 to vector<8x32xf32>
    %259 = arith.mulf %258, %257 : vector<8x32xf32>
    %cst_67 = arith.constant 1.000000e+00 : f32
    %260 = vector.broadcast %cst_67 : f32 to vector<8x32xf32>
    %261 = arith.subf %259, %260 : vector<8x32xf32>
    %262 = vector.extract_strided_slice %254 {offsets = [0, 96], sizes = [8, 32], strides = [1, 1]} : vector<8x128xf32> to vector<8x32xf32>
    %263 = arith.mulf %256, %219 : vector<8x32xf32>
    %264 = arith.mulf %255, %261 : vector<8x32xf32>
    %265 = arith.addf %263, %264 : vector<8x32xf32>
    %266 = math.tanh %265 : vector<8x32xf32>
    %267 = arith.mulf %262, %266 : vector<8x32xf32>
    %268 = arith.truncf %267 : vector<8x32xf32> to vector<8x32xbf16>
    %cst_68 = arith.constant dense<0.000000e+00> : vector<8x256xf32>
    %269 = tpu.matmul %268, %7, %cst_68 {dimension_numbers = #tpu.dot_dimension_numbers<[1], [0], [0], [1], [0, 0, 1, 1], [], []>} : vector<8x32xbf16>, vector<32x256xbf16>, vector<8x256xf32> -> vector<8x256xf32>
    %270 = vector.extract_strided_slice %269 {offsets = [0, 0], sizes = [8, 128], strides = [1, 1]} : vector<8x256xf32> to vector<8x128xf32>
    %271 = vector.extract_strided_slice %269 {offsets = [0, 128], sizes = [8, 128], strides = [1, 1]} : vector<8x256xf32> to vector<8x128xf32>
    %272 = arith.addf %271, %247 : vector<8x128xf32>
    %273 = arith.addf %272, %11 : vector<8x128xf32>
    %274 = arith.negf %273 : vector<8x128xf32>
    %275 = math.exp %274 : vector<8x128xf32>
    %cst_69 = arith.constant 1.000000e+00 : f32
    %276 = vector.broadcast %cst_69 : f32 to vector<8x128xf32>
    %277 = arith.addf %276, %275 : vector<8x128xf32>
    %278 = arith.divf %276, %277 : vector<8x128xf32>
    %279 = vector.extract_strided_slice %278 {offsets = [0, 0], sizes = [8, 32], strides = [1, 1]} : vector<8x128xf32> to vector<8x32xf32>
    %280 = vector.extract_strided_slice %278 {offsets = [0, 32], sizes = [8, 32], strides = [1, 1]} : vector<8x128xf32> to vector<8x32xf32>
    %281 = vector.extract_strided_slice %278 {offsets = [0, 64], sizes = [8, 32], strides = [1, 1]} : vector<8x128xf32> to vector<8x32xf32>
    %cst_70 = arith.constant 2.000000e+00 : f32
    %282 = vector.broadcast %cst_70 : f32 to vector<8x32xf32>
    %283 = arith.mulf %282, %281 : vector<8x32xf32>
    %cst_71 = arith.constant 1.000000e+00 : f32
    %284 = vector.broadcast %cst_71 : f32 to vector<8x32xf32>
    %285 = arith.subf %283, %284 : vector<8x32xf32>
    %286 = vector.extract_strided_slice %278 {offsets = [0, 96], sizes = [8, 32], strides = [1, 1]} : vector<8x128xf32> to vector<8x32xf32>
    %287 = arith.mulf %280, %243 : vector<8x32xf32>
    %288 = arith.mulf %279, %285 : vector<8x32xf32>
    %289 = arith.addf %287, %288 : vector<8x32xf32>
    %290 = math.tanh %289 : vector<8x32xf32>
    %291 = arith.mulf %286, %290 : vector<8x32xf32>
    %292 = arith.truncf %291 : vector<8x32xf32> to vector<8x32xbf16>
    %cst_72 = arith.constant dense<0.000000e+00> : vector<8x128xf32>
    %293 = tpu.matmul %292, %8, %cst_72 {dimension_numbers = #tpu.dot_dimension_numbers<[1], [0], [0], [1], [0, 0, 1, 1], [], []>} : vector<8x32xbf16>, vector<32x128xbf16>, vector<8x128xf32> -> vector<8x128xf32>
    %c48 = arith.constant 48 : index
    %c0_73 = arith.constant 0 : index
    %294 = vector.load %arg9[%c48, %c0_73] : memref<64x128xf32, #tpu.memory_space<vmem>>, vector<8x128xf32>
    %295 = arith.addf %294, %270 : vector<8x128xf32>
    %296 = arith.negf %295 : vector<8x128xf32>
    %297 = math.exp %296 : vector<8x128xf32>
    %cst_74 = arith.constant 1.000000e+00 : f32
    %298 = vector.broadcast %cst_74 : f32 to vector<8x128xf32>
    %299 = arith.addf %298, %297 : vector<8x128xf32>
    %300 = arith.divf %298, %299 : vector<8x128xf32>
    %301 = vector.extract_strided_slice %300 {offsets = [0, 0], sizes = [8, 32], strides = [1, 1]} : vector<8x128xf32> to vector<8x32xf32>
    %302 = vector.extract_strided_slice %300 {offsets = [0, 32], sizes = [8, 32], strides = [1, 1]} : vector<8x128xf32> to vector<8x32xf32>
    %303 = vector.extract_strided_slice %300 {offsets = [0, 64], sizes = [8, 32], strides = [1, 1]} : vector<8x128xf32> to vector<8x32xf32>
    %cst_75 = arith.constant 2.000000e+00 : f32
    %304 = vector.broadcast %cst_75 : f32 to vector<8x32xf32>
    %305 = arith.mulf %304, %303 : vector<8x32xf32>
    %cst_76 = arith.constant 1.000000e+00 : f32
    %306 = vector.broadcast %cst_76 : f32 to vector<8x32xf32>
    %307 = arith.subf %305, %306 : vector<8x32xf32>
    %308 = vector.extract_strided_slice %300 {offsets = [0, 96], sizes = [8, 32], strides = [1, 1]} : vector<8x128xf32> to vector<8x32xf32>
    %309 = arith.mulf %302, %265 : vector<8x32xf32>
    %310 = arith.mulf %301, %307 : vector<8x32xf32>
    %311 = arith.addf %309, %310 : vector<8x32xf32>
    %312 = math.tanh %311 : vector<8x32xf32>
    %313 = arith.mulf %308, %312 : vector<8x32xf32>
    %314 = arith.truncf %313 : vector<8x32xf32> to vector<8x32xbf16>
    %cst_77 = arith.constant dense<0.000000e+00> : vector<8x256xf32>
    %315 = tpu.matmul %314, %7, %cst_77 {dimension_numbers = #tpu.dot_dimension_numbers<[1], [0], [0], [1], [0, 0, 1, 1], [], []>} : vector<8x32xbf16>, vector<32x256xbf16>, vector<8x256xf32> -> vector<8x256xf32>
    %316 = vector.extract_strided_slice %315 {offsets = [0, 0], sizes = [8, 128], strides = [1, 1]} : vector<8x256xf32> to vector<8x128xf32>
    %317 = vector.extract_strided_slice %315 {offsets = [0, 128], sizes = [8, 128], strides = [1, 1]} : vector<8x256xf32> to vector<8x128xf32>
    %318 = arith.addf %317, %293 : vector<8x128xf32>
    %319 = arith.addf %318, %11 : vector<8x128xf32>
    %320 = arith.negf %319 : vector<8x128xf32>
    %321 = math.exp %320 : vector<8x128xf32>
    %cst_78 = arith.constant 1.000000e+00 : f32
    %322 = vector.broadcast %cst_78 : f32 to vector<8x128xf32>
    %323 = arith.addf %322, %321 : vector<8x128xf32>
    %324 = arith.divf %322, %323 : vector<8x128xf32>
    %325 = vector.extract_strided_slice %324 {offsets = [0, 0], sizes = [8, 32], strides = [1, 1]} : vector<8x128xf32> to vector<8x32xf32>
    %326 = vector.extract_strided_slice %324 {offsets = [0, 32], sizes = [8, 32], strides = [1, 1]} : vector<8x128xf32> to vector<8x32xf32>
    %327 = vector.extract_strided_slice %324 {offsets = [0, 64], sizes = [8, 32], strides = [1, 1]} : vector<8x128xf32> to vector<8x32xf32>
    %cst_79 = arith.constant 2.000000e+00 : f32
    %328 = vector.broadcast %cst_79 : f32 to vector<8x32xf32>
    %329 = arith.mulf %328, %327 : vector<8x32xf32>
    %cst_80 = arith.constant 1.000000e+00 : f32
    %330 = vector.broadcast %cst_80 : f32 to vector<8x32xf32>
    %331 = arith.subf %329, %330 : vector<8x32xf32>
    %332 = vector.extract_strided_slice %324 {offsets = [0, 96], sizes = [8, 32], strides = [1, 1]} : vector<8x128xf32> to vector<8x32xf32>
    %333 = arith.mulf %326, %289 : vector<8x32xf32>
    %334 = arith.mulf %325, %331 : vector<8x32xf32>
    %335 = arith.addf %333, %334 : vector<8x32xf32>
    %336 = math.tanh %335 : vector<8x32xf32>
    %337 = arith.mulf %332, %336 : vector<8x32xf32>
    %338 = arith.truncf %337 : vector<8x32xf32> to vector<8x32xbf16>
    %cst_81 = arith.constant dense<0.000000e+00> : vector<8x128xf32>
    %339 = tpu.matmul %338, %8, %cst_81 {dimension_numbers = #tpu.dot_dimension_numbers<[1], [0], [0], [1], [0, 0, 1, 1], [], []>} : vector<8x32xbf16>, vector<32x128xbf16>, vector<8x128xf32> -> vector<8x128xf32>
    %c56 = arith.constant 56 : index
    %c0_82 = arith.constant 0 : index
    %340 = vector.load %arg9[%c56, %c0_82] : memref<64x128xf32, #tpu.memory_space<vmem>>, vector<8x128xf32>
    %341 = arith.addf %340, %316 : vector<8x128xf32>
    %342 = arith.negf %341 : vector<8x128xf32>
    %343 = math.exp %342 : vector<8x128xf32>
    %cst_83 = arith.constant 1.000000e+00 : f32
    %344 = vector.broadcast %cst_83 : f32 to vector<8x128xf32>
    %345 = arith.addf %344, %343 : vector<8x128xf32>
    %346 = arith.divf %344, %345 : vector<8x128xf32>
    %347 = vector.extract_strided_slice %346 {offsets = [0, 0], sizes = [8, 32], strides = [1, 1]} : vector<8x128xf32> to vector<8x32xf32>
    %348 = vector.extract_strided_slice %346 {offsets = [0, 32], sizes = [8, 32], strides = [1, 1]} : vector<8x128xf32> to vector<8x32xf32>
    %349 = vector.extract_strided_slice %346 {offsets = [0, 64], sizes = [8, 32], strides = [1, 1]} : vector<8x128xf32> to vector<8x32xf32>
    %cst_84 = arith.constant 2.000000e+00 : f32
    %350 = vector.broadcast %cst_84 : f32 to vector<8x32xf32>
    %351 = arith.mulf %350, %349 : vector<8x32xf32>
    %cst_85 = arith.constant 1.000000e+00 : f32
    %352 = vector.broadcast %cst_85 : f32 to vector<8x32xf32>
    %353 = arith.subf %351, %352 : vector<8x32xf32>
    %354 = vector.extract_strided_slice %346 {offsets = [0, 96], sizes = [8, 32], strides = [1, 1]} : vector<8x128xf32> to vector<8x32xf32>
    %355 = arith.mulf %348, %311 : vector<8x32xf32>
    %356 = arith.mulf %347, %353 : vector<8x32xf32>
    %357 = arith.addf %355, %356 : vector<8x32xf32>
    %358 = math.tanh %357 : vector<8x32xf32>
    %359 = arith.mulf %354, %358 : vector<8x32xf32>
    %360 = arith.truncf %359 : vector<8x32xf32> to vector<8x32xbf16>
    %cst_86 = arith.constant dense<0.000000e+00> : vector<8x256xf32>
    %361 = tpu.matmul %360, %7, %cst_86 {dimension_numbers = #tpu.dot_dimension_numbers<[1], [0], [0], [1], [0, 0, 1, 1], [], []>} : vector<8x32xbf16>, vector<32x256xbf16>, vector<8x256xf32> -> vector<8x256xf32>
    %362 = vector.extract_strided_slice %361 {offsets = [0, 128], sizes = [8, 128], strides = [1, 1]} : vector<8x256xf32> to vector<8x128xf32>
    %363 = arith.addf %362, %339 : vector<8x128xf32>
    %364 = arith.addf %363, %11 : vector<8x128xf32>
    %365 = arith.negf %364 : vector<8x128xf32>
    %366 = math.exp %365 : vector<8x128xf32>
    %cst_87 = arith.constant 1.000000e+00 : f32
    %367 = vector.broadcast %cst_87 : f32 to vector<8x128xf32>
    %368 = arith.addf %367, %366 : vector<8x128xf32>
    %369 = arith.divf %367, %368 : vector<8x128xf32>
    %370 = vector.extract_strided_slice %369 {offsets = [0, 0], sizes = [8, 32], strides = [1, 1]} : vector<8x128xf32> to vector<8x32xf32>
    %371 = vector.extract_strided_slice %369 {offsets = [0, 32], sizes = [8, 32], strides = [1, 1]} : vector<8x128xf32> to vector<8x32xf32>
    %372 = vector.extract_strided_slice %369 {offsets = [0, 64], sizes = [8, 32], strides = [1, 1]} : vector<8x128xf32> to vector<8x32xf32>
    %cst_88 = arith.constant 2.000000e+00 : f32
    %373 = vector.broadcast %cst_88 : f32 to vector<8x32xf32>
    %374 = arith.mulf %373, %372 : vector<8x32xf32>
    %cst_89 = arith.constant 1.000000e+00 : f32
    %375 = vector.broadcast %cst_89 : f32 to vector<8x32xf32>
    %376 = arith.subf %374, %375 : vector<8x32xf32>
    %377 = vector.extract_strided_slice %369 {offsets = [0, 96], sizes = [8, 32], strides = [1, 1]} : vector<8x128xf32> to vector<8x32xf32>
    %378 = arith.mulf %371, %335 : vector<8x32xf32>
    %379 = arith.mulf %370, %376 : vector<8x32xf32>
    %380 = arith.addf %378, %379 : vector<8x32xf32>
    %381 = math.tanh %380 : vector<8x32xf32>
    %382 = arith.mulf %377, %381 : vector<8x32xf32>
    %383 = arith.truncf %382 : vector<8x32xf32> to vector<8x32xbf16>
    %c0_90 = arith.constant 0 : index
    %c0_91 = arith.constant 0 : index
    %384 = vector.load %arg6[%c0_90, %c0_91] : memref<32x128xbf16, #tpu.memory_space<vmem>>, vector<32x128xbf16>
    %cst_92 = arith.constant dense<0.000000e+00> : vector<8x128xf32>
    %385 = tpu.matmul %383, %384, %cst_92 {dimension_numbers = #tpu.dot_dimension_numbers<[1], [0], [0], [1], [0, 0, 1, 1], [], []>} : vector<8x32xbf16>, vector<32x128xbf16>, vector<8x128xf32> -> vector<8x128xf32>
    %c0_93 = arith.constant 0 : index
    %c0_94 = arith.constant 0 : index
    %386 = vector.load %arg7[%c0_93, %c0_94] : memref<1x128xf32, #tpu.memory_space<vmem>>, vector<1x128xf32>
    %387 = vector.broadcast %386 : vector<1x128xf32> to vector<8x128xf32>
    %388 = arith.addf %385, %387 : vector<8x128xf32>
    %c0_95 = arith.constant 0 : index
    %c0_96 = arith.constant 0 : index
    %389 = vector.load %arg8[%c0_95, %c0_96] : memref<8x128xf32, #tpu.memory_space<vmem>>, vector<8x128xf32>
    tpu.vector_store %arg8[%c0_95, %c0_96], %388 {strides = array<i32>} : memref<8x128xf32, #tpu.memory_space<vmem>>, vector<8x128xf32>,
    return
  }
}

</mosaic_0001>

<llo_original>
// kernel: tpu_custom_call.1
$region0: #{tpu_custom_call.1}
  #allocation0 [shape = 'u32[]', space=smem, size = 0x4, offset = 0x4, fixed_abs, tag = 'smem constant byte address 0x4 - core index']
  #allocation1 [shape = 'u32[72,128]{1,0:T(1,128)}', space=vmem, size = 0x9000, scoped, tag = 'internal scratch']
  #allocation2 [shape = 'f32[64,128]{1,0:T(8,128)}', space=vmem, size = 0x8000, scoped, tag = 'scratch operand']
  %s0 = inlined_call_operand.vmem [shape: bf16[64,8], index: 0, kind: input, shape index: {}]
  %s1 = inlined_call_operand.vmem [shape: bf16[8,128], index: 1, kind: input, shape index: {}]
  %s2 = inlined_call_operand.vmem [shape: f32[1,128], index: 2, kind: input, shape index: {}]
  %s3 = inlined_call_operand.vmem [shape: bf16[32,256], index: 3, kind: input, shape index: {}]
  %s4 = inlined_call_operand.hbm [shape: bf16[32,128], index: 4, kind: input, shape index: {}]
  %s5 = inlined_call_operand.vmem [shape: f32[1,128], index: 5, kind: input, shape index: {}]
  %s6 = inlined_call_operand.hbm [shape: bf16[32,128], index: 6, kind: input, shape index: {}]
  %s7 = inlined_call_operand.vmem [shape: f32[1,128], index: 7, kind: input, shape index: {}]
  %s8 = inlined_call_operand.hbm [shape: f32[8,128], index: 8, kind: output, shape index: {}]
  %s9 = sld [smem:[#allocation0]]
  $region50: #{tpu_custom_call.1} parent=0
    _
  %s11 = ssub.s32 1, %s9
  %s12 = scalar_select 0, %s11, %s9
  $region1: #{tpu_custom_call.1} parent=0
    #allocation3 [shape = 'u8[8192]{0}', space=vmem, size = 0x2000, scoped, tag = 'input window, operand 4, single buffered']
    #allocation4 [shape = 's32[1]{0}', space=sflag, size = 0x4, scoped, tag = 'scoped memory for tpu_custom_call.1']
    #allocation5 [shape = 's32[1]{0}', space=sflag, size = 0x4, scoped, tag = 'scoped memory for tpu_custom_call.1']
    #allocation6 [shape = 'u8[8192]{0}', space=vmem, size = 0x2000, scoped, tag = 'input window, operand 6, single buffered']
    #allocation7 [shape = 's32[1]{0}', space=sflag, size = 0x4, scoped, tag = 'scoped memory for tpu_custom_call.1']
    #allocation8 [shape = 'u8[4096]{0}', space=vmem, size = 0x1000, scoped, tag = 'output window, operand 0, single buffered']
    %13 = vsyncpa [#allocation4], 0
    %14 = vsyncpa [#allocation7], 0
    %15 = vsyncpa [#allocation5], 0
    // Predicated region
    $region2: #{tpu_custom_call.1} parent=1 // pred_check
      _
    $region3: #{tpu_custom_call.1} parent=1 // pred_check_branch
      %17 = sbr.rel (0) target = $region5
    $region4: #{tpu_custom_call.1} parent=1 // pred_region
      _
    $region5: #{tpu_custom_call.1} parent=1 // pred_fallthru
      _
    // Predicated region
    $region6: #{tpu_custom_call.1} parent=1 // pred_check
      _
    $region7: #{tpu_custom_call.1} parent=1 // pred_check_branch
      %19 = sbr.rel (0) target = $region9
    $region8: #{tpu_custom_call.1} parent=1 // pred_region
      _
    $region9: #{tpu_custom_call.1} parent=1 // pred_fallthru
      _
    // Predicated region
    $region10: #{tpu_custom_call.1} parent=1 // pred_check
      _
    $region11: #{tpu_custom_call.1} parent=1 // pred_check_branch
      %21 = sbr.rel (0) target = $region13
    $region12: #{tpu_custom_call.1} parent=1 // pred_region
      _
    $region13: #{tpu_custom_call.1} parent=1 // pred_fallthru
      _
    // Predicated region
    $region14: #{tpu_custom_call.1} parent=1 // pred_check
      _
    $region15: #{tpu_custom_call.1} parent=1 // pred_check_branch
      %23 = sbr.rel (0) target = $region17
    $region16: #{tpu_custom_call.1} parent=1 // pred_region
      _
    $region17: #{tpu_custom_call.1} parent=1 // pred_fallthru
      _
    // Predicated region
    $region18: #{tpu_custom_call.1} parent=1 // pred_check
      _
    $region19: #{tpu_custom_call.1} parent=1 // pred_check_branch
      %25 = sbr.rel (0) target = $region21
    $region20: #{tpu_custom_call.1} parent=1 // pred_region
      %27 = vsyncadd [#allocation4], 0
      %s28 = sshll.u32 %s4, 4
      %s29 = int_to_ptr.hbm [resolvable:$true] %s28
      %s30 = sshll.u32 [#allocation3], 4
      %s31 = int_to_ptr.vmem [resolvable:$true] %s30
      %36 = dma.hbm_to_vmem [thread:$0]  %s29, 256, %s31, [#allocation4], 64, 64, 4
    $region21: #{tpu_custom_call.1} parent=1 // pred_fallthru
      _
    // Predicated region
    $region22: #{tpu_custom_call.1} parent=1 // pred_check
      _
    $region23: #{tpu_custom_call.1} parent=1 // pred_check_branch
      %38 = sbr.rel (0) target = $region25
    $region24: #{tpu_custom_call.1} parent=1 // pred_region
      _
    $region25: #{tpu_custom_call.1} parent=1 // pred_fallthru
      _
    // Predicated region
    $region26: #{tpu_custom_call.1} parent=1 // pred_check
      _
    $region27: #{tpu_custom_call.1} parent=1 // pred_check_branch
      %40 = sbr.rel (0) target = $region29
    $region28: #{tpu_custom_call.1} parent=1 // pred_region
      %42 = vsyncadd [#allocation7], 0
      %s43 = sshll.u32 %s6, 4
      %s44 = int_to_ptr.hbm [resolvable:$true] %s43
      %s45 = sshll.u32 [#allocation6], 4
      %s46 = int_to_ptr.vmem [resolvable:$true] %s45
      %51 = dma.hbm_to_vmem [thread:$0]  %s44, 256, %s46, [#allocation7], 64, 64, 4
    $region29: #{tpu_custom_call.1} parent=1 // pred_fallthru
      _
    // Predicated region
    $region30: #{tpu_custom_call.1} parent=1 // pred_check
      _
    $region31: #{tpu_custom_call.1} parent=1 // pred_check_branch
      %53 = sbr.rel (0) target = $region33
    $region32: #{tpu_custom_call.1} parent=1 // pred_region
      _
    $region33: #{tpu_custom_call.1} parent=1 // pred_fallthru
      _
    // Predicated region
    $region34: #{tpu_custom_call.1} parent=1 // pred_check
      _
    $region35: #{tpu_custom_call.1} parent=1 // pred_check_branch
      %55 = sbr.rel (0) target = $region37
    $region36: #{tpu_custom_call.1} parent=1 // pred_region
      %57 = dma.done [#allocation4], 256
    $region37: #{tpu_custom_call.1} parent=1 // pred_fallthru
      _
    // Predicated region
    $region38: #{tpu_custom_call.1} parent=1 // pred_check
      _
    $region39: #{tpu_custom_call.1} parent=1 // pred_check_branch
      %59 = sbr.rel (0) target = $region41
    $region40: #{tpu_custom_call.1} parent=1 // pred_region
      %61 = dma.done [#allocation7], 256
    $region41: #{tpu_custom_call.1} parent=1 // pred_fallthru
      _
    %v63 = vld [vmem:[%s0] sm:$0xf]
    %v64 = vld [vmem:[%s0 + $0x4] sm:$0xf]
    %v65 = vld [vmem:[%s0 + $0x8] sm:$0xf]
    %v66 = vld [vmem:[%s0 + $0xc] sm:$0xf]
    %v67 = vld [vmem:[%s0 + $0x10] sm:$0xf]
    %v68 = vld [vmem:[%s0 + $0x14] sm:$0xf]
    %v69 = vld [vmem:[%s0 + $0x18] sm:$0xf]
    %v70 = vld [vmem:[%s0 + $0x1c] sm:$0xf]
    %v71 = vld [vmem:[%s1] sm:$0xf]
    %v72 = vld [vmem:[%s2] sm:$0x1]
    %v74 = vperm.slane %v72, 0
    %v84 = vunpack.c.l.b16 %v63
    %v85 = vunpack.c.l.b16 %v64
    %v86 = vunpack.c.l.b16 %v65
    %v87 = vunpack.c.l.b16 %v66
    %v88 = vunpack.c.l.b16 %v67
    %v89 = vunpack.c.l.b16 %v68
    %v90 = vunpack.c.l.b16 %v69
    %v91 = vunpack.c.l.b16 %v70
    %v92 = vpack.c.b16 %v85, %v84
    %v93 = vpack.c.b16 %v87, %v86
    %v94 = vpack.c.b16 %v89, %v88
    %v95 = vpack.c.b16 %v91, %v90
    %vm96 = vcmask 64512
    %v98 = vsel %vm96, %v92, 0
    %v101 = vsel %vm96, %v93, 0
    %v104 = vsel %vm96, %v94, 0
    %v107 = vsel %vm96, %v95, 0
    %vm109 = vcmask 1043456
    %v111 = vsel %vm109, %v71, 0
    %113 = vmatpush.bf16.msra.mxu0 0
    %114 = vmatpush.bf16.msra.mxu0 0
    %115 = vmatpush.bf16.msra.mxu0 0
    %116 = vmatpush.bf16.msra.mxu0 0
    %117 = vmatpush.bf16.msra.mxu0 0
    %118 = vmatpush.bf16.msra.mxu0 0
    %119 = vmatpush.bf16.msra.mxu0 0
    %120 = vmatpush.bf16.msra.mxu0 %v111
    %121 = vmatmul.bf16.gmra.mxu0 %v98
    %v122 = vpop.f32.mrf.mxu0
    %v123 = vadd.f32 %v74, %v122
    %v124 = vpop.f32.mrf.mxu0
    %v125 = vadd.f32 %v74, %v124
    %126 = vmatmul.bf16.gmra.mxu0 %v101
    %v127 = vpop.f32.mrf.mxu0
    %v128 = vadd.f32 %v74, %v127
    %v129 = vpop.f32.mrf.mxu0
    %v130 = vadd.f32 %v74, %v129
    %131 = vmatmul.bf16.gmra.mxu0 %v104
    %v132 = vpop.f32.mrf.mxu0
    %v133 = vadd.f32 %v74, %v132
    %v134 = vpop.f32.mrf.mxu0
    %v135 = vadd.f32 %v74, %v134
    %136 = vmatmul.bf16.gmra.mxu0 %v107
    %v137 = vpop.f32.mrf.mxu0
    %v138 = vadd.f32 %v74, %v137
    %v139 = vpop.f32.mrf.mxu0
    %v140 = vadd.f32 %v74, %v139
    %141 = vdwg.mxu0
    %142 = vst [vmem:[#allocation2] sm:$0xff] %v123
    %143 = vst [vmem:[#allocation2 + $0x8] sm:$0xff] %v125
    %144 = vst [vmem:[#allocation2 + $0x10] sm:$0xff] %v128
    %145 = vst [vmem:[#allocation2 + $0x18] sm:$0xff] %v130
    %146 = vst [vmem:[#allocation2 + $0x20] sm:$0xff] %v133
    %147 = vst [vmem:[#allocation2 + $0x28] sm:$0xff] %v135
    %148 = vst [vmem:[#allocation2 + $0x30] sm:$0xff] %v138
    %149 = vst [vmem:[#allocation2 + $0x38] sm:$0xff] %v140
    %v150 = vld [vmem:[%s3] sm:$0xff]
    %v151 = vld [vmem:[%s3 + $0x8] sm:$0xff]
    %v152 = vld [vmem:[%s3 + $0x10] sm:$0xff]
    %v153 = vld [vmem:[%s3 + $0x18] sm:$0xff]
    %v154 = vld [vmem:[#allocation3] sm:$0xf]
    %v155 = vld [vmem:[#allocation3 + $0x4] sm:$0xf]
    %v156 = vld [vmem:[#allocation3 + $0x8] sm:$0xf]
    %v157 = vld [vmem:[#allocation3 + $0xc] sm:$0xf]
    %v158 = vld [vmem:[%s5] sm:$0x1]
    %v160 = vperm.slane %v158, 0
    %v166 = vunpack.c.l.b16 %v154
    %v167 = vunpack.c.l.b16 %v155
    %v168 = vunpack.c.l.b16 %v156
    %v169 = vunpack.c.l.b16 %v157
    %v170 = vpack.c.b16 %v167, %v166
    %v171 = vpack.c.b16 %v169, %v168
    %vm174 = vcmask 261120
    %v176 = vsel %vm174, 0, 0
    %178 = vmatpush.bf16.msra.mxu0 0
    %179 = vmatpush.bf16.msra.mxu0 0
    %180 = vmatpush.bf16.msra.mxu0 0
    %181 = vmatpush.bf16.msra.mxu0 0
    %182 = vmatpush.bf16.msra.mxu0 0
    %183 = vmatpush.bf16.msra.mxu0 0
    %184 = vmatpush.bf16.msra.mxu0 %v171
    %185 = vmatpush.bf16.msra.mxu0 %v170
    %186 = vmatmul.bf16.gmra.mxu0 %v176
    %v187 = vpop.f32.mrf.mxu0
    %v188 = vadd.f32 0.0, %v187
    %v189 = vpop.f32.mrf.mxu0
    %190 = vdwg.mxu0
    %v191 = vld [vmem:[#allocation2] sm:$0xff]
    %v192 = vadd.f32 %v191, 0.0
    %v193 = vxor.u32 %v192, 2147483648
    %v194 = vmul.f32 %v193, 1.442695
    %v195 = vpow.pop %v194
    %v196 = vadd.f32 %v195, 1.0
    %v197 = vrcp.pop %v196
    %v198 = vmul.f32 %v196, %v197
    %v199 = vsub.f32 1.0, %v198
    %v200 = vmul.f32 %v197, %v199
    %v201 = vadd.f32 %v197, %v200
    %vm202 = vweird.f32 %v196
    %vm203 = vweird.f32 %v197
    %vm204 = vmor %vm202, %vm203
    %v205 = vsel %vm204, %v197, %v201
    %v206 = vand.u32 2147483647, %v196
    %vm207 = vcmp.eq.f32.partialorder %v206, 8.507059e+37
    %v208 = vand.u32 %v196, 2147483648
    %v209 = vor.u32 1.1754944e-38, %v208
    %v210 = vsel %vm207, %v209, %v205
    %v211 = vmul.f32 1.0, %v210
    %v212 = vmul.f32 %v211, 2.0
    %v213 = vsub.f32 %v212, 1.0
    %v214 = vmul.f32 %v211, 0.0
    %216 = vrot.lane.b32.xlu0 %v213, 64
    %v217 = vpop.permute.xlu0 %216
    %v219 = vmul.f32 %v211, %v217
    %221 = vrot.lane.b32.xlu0 %v219, 32
    %v222 = vpop.permute.xlu0 %221
    %v224 = vadd.f32 %v214, %v222
    %v225 = vtanh.pop %v224
    %227 = vrot.lane.b32.xlu0 %v225, 64
    %v228 = vpop.permute.xlu0 %227
    %v230 = vmul.f32 %v211, %v228
    %v231 = vpack.c.bf16 %v230, %v230
    %233 = vrot.lane.b32.xlu0 %v231, 32
    %v234 = vpop.permute.xlu0 %233
    %v239 = vunpack.c.l.b16 %v150
    %v240 = vunpack.c.h.b16 %v150
    %v241 = vunpack.c.l.b16 %v151
    %v242 = vunpack.c.h.b16 %v151
    %v243 = vunpack.c.l.b16 %v152
    %v244 = vunpack.c.h.b16 %v152
    %v245 = vunpack.c.l.b16 %v153
    %v246 = vunpack.c.h.b16 %v153
    %v247 = vpack.c.b16 %v241, %v239
    %v248 = vpack.c.b16 %v242, %v240
    %v249 = vpack.c.b16 %v245, %v243
    %v250 = vpack.c.b16 %v246, %v244
    %v256 = vsel %vm174, %v234, 0
    %258 = vmatpush.bf16.msra.mxu0 0
    %259 = vmatpush.bf16.msra.mxu0 0
    %260 = vmatpush.bf16.msra.mxu0 0
    %261 = vmatpush.bf16.msra.mxu0 0
    %262 = vmatpush.bf16.msra.mxu0 0
    %263 = vmatpush.bf16.msra.mxu0 0
    %264 = vmatpush.bf16.msra.mxu0 %v249
    %265 = vmatpush.bf16.msra.mxu0 %v247
    %266 = vmatmul.bf16.gmra.mxu0 %v256
    %v267 = vpop.f32.mrf.mxu0
    %v268 = vadd.f32 0.0, %v267
    %v269 = vpop.f32.mrf.mxu0
    %270 = vdwg.mxu0
    %271 = vmatpush.bf16.msra.mxu0 0
    %272 = vmatpush.bf16.msra.mxu0 0
    %273 = vmatpush.bf16.msra.mxu0 0
    %274 = vmatpush.bf16.msra.mxu0 0
    %275 = vmatpush.bf16.msra.mxu0 0
    %276 = vmatpush.bf16.msra.mxu0 0
    %277 = vmatpush.bf16.msra.mxu0 %v250
    %278 = vmatpush.bf16.msra.mxu0 %v248
    %279 = vmatmul.bf16.gmra.mxu0 %v256
    %v280 = vpop.f32.mrf.mxu0
    %v281 = vadd.f32 0.0, %v280
    %v282 = vpop.f32.mrf.mxu0
    %283 = vdwg.mxu0
    %v284 = vadd.f32 %v281, %v188
    %v285 = vadd.f32 %v284, %v160
    %v286 = vxor.u32 %v285, 2147483648
    %v287 = vmul.f32 %v286, 1.442695
    %v288 = vpow.pop %v287
    %v289 = vadd.f32 %v288, 1.0
    %v290 = vrcp.pop %v289
    %v291 = vmul.f32 %v289, %v290
    %v292 = vsub.f32 1.0, %v291
    %v293 = vmul.f32 %v290, %v292
    %v294 = vadd.f32 %v290, %v293
    %vm295 = vweird.f32 %v289
    %vm296 = vweird.f32 %v290
    %vm297 = vmor %vm295, %vm296
    %v298 = vsel %vm297, %v290, %v294
    %v299 = vand.u32 2147483647, %v289
    %vm300 = vcmp.eq.f32.partialorder %v299, 8.507059e+37
    %v301 = vand.u32 %v289, 2147483648
    %v302 = vor.u32 1.1754944e-38, %v301
    %v303 = vsel %vm300, %v302, %v298
    %v304 = vmul.f32 1.0, %v303
    %v305 = vmul.f32 %v304, 2.0
    %v306 = vsub.f32 %v305, 1.0
    %v307 = vmul.f32 %v304, 0.0
    %309 = vrot.lane.b32.xlu0 %v306, 64
    %v310 = vpop.permute.xlu0 %309
    %v312 = vmul.f32 %v304, %v310
    %314 = vrot.lane.b32.xlu0 %v312, 32
    %v315 = vpop.permute.xlu0 %314
    %v317 = vadd.f32 %v307, %v315
    %v318 = vtanh.pop %v317
    %320 = vrot.lane.b32.xlu0 %v318, 64
    %v321 = vpop.permute.xlu0 %320
    %v323 = vmul.f32 %v304, %v321
    %v324 = vpack.c.bf16 %v323, %v323
    %326 = vrot.lane.b32.xlu0 %v324, 32
    %v327 = vpop.permute.xlu0 %326
    %v329 = vsel %vm174, %v327, 0
    %331 = vmatpush.bf16.msra.mxu0 0
    %332 = vmatpush.bf16.msra.mxu0 0
    %333 = vmatpush.bf16.msra.mxu0 0
    %334 = vmatpush.bf16.msra.mxu0 0
    %335 = vmatpush.bf16.msra.mxu0 0
    %336 = vmatpush.bf16.msra.mxu0 0
    %337 = vmatpush.bf16.msra.mxu0 %v171
    %338 = vmatpush.bf16.msra.mxu0 %v170
    %339 = vmatmul.bf16.gmra.mxu0 %v329
    %v340 = vpop.f32.mrf.mxu0
    %v341 = vadd.f32 0.0, %v340
    %v342 = vpop.f32.mrf.mxu0
    %343 = vdwg.mxu0
    %v344 = vld [vmem:[#allocation2 + $0x8] sm:$0xff]
    %v345 = vadd.f32 %v344, %v268
    %v346 = vxor.u32 %v345, 2147483648
    %v347 = vmul.f32 %v346, 1.442695
    %v348 = vpow.pop %v347
    %v349 = vadd.f32 %v348, 1.0
    %v350 = vrcp.pop %v349
    %v351 = vmul.f32 %v349, %v350
    %v352 = vsub.f32 1.0, %v351
    %v353 = vmul.f32 %v350, %v352
    %v354 = vadd.f32 %v350, %v353
    %vm355 = vweird.f32 %v349
    %vm356 = vweird.f32 %v350
    %vm357 = vmor %vm355, %vm356
    %v358 = vsel %vm357, %v350, %v354
    %v359 = vand.u32 2147483647, %v349
    %vm360 = vcmp.eq.f32.partialorder %v359, 8.507059e+37
    %v361 = vand.u32 %v349, 2147483648
    %v362 = vor.u32 1.1754944e-38, %v361
    %v363 = vsel %vm360, %v362, %v358
    %v364 = vmul.f32 1.0, %v363
    %v365 = vmul.f32 %v364, 2.0
    %v366 = vsub.f32 %v365, 1.0
    %v367 = vmul.f32 %v364, %v224
    %369 = vrot.lane.b32.xlu0 %v366, 64
    %v370 = vpop.permute.xlu0 %369
    %v372 = vmul.f32 %v364, %v370
    %374 = vrot.lane.b32.xlu0 %v372, 32
    %v375 = vpop.permute.xlu0 %374
    %v377 = vadd.f32 %v367, %v375
    %v378 = vtanh.pop %v377
    %380 = vrot.lane.b32.xlu0 %v378, 64
    %v381 = vpop.permute.xlu0 %380
    %v383 = vmul.f32 %v364, %v381
    %v384 = vpack.c.bf16 %v383, %v383
    %386 = vrot.lane.b32.xlu0 %v384, 32
    %v387 = vpop.permute.xlu0 %386
    %v389 = vsel %vm174, %v387, 0
    %391 = vmatpush.bf16.msra.mxu0 0
    %392 = vmatpush.bf16.msra.mxu0 0
    %393 = vmatpush.bf16.msra.mxu0 0
    %394 = vmatpush.bf16.msra.mxu0 0
    %395 = vmatpush.bf16.msra.mxu0 0
    %396 = vmatpush.bf16.msra.mxu0 0
    %397 = vmatpush.bf16.msra.mxu0 %v249
    %398 = vmatpush.bf16.msra.mxu0 %v247
    %399 = vmatmul.bf16.gmra.mxu0 %v389
    %v400 = vpop.f32.mrf.mxu0
    %v401 = vadd.f32 0.0, %v400
    %v402 = vpop.f32.mrf.mxu0
    %403 = vdwg.mxu0
    %404 = vmatpush.bf16.msra.mxu0 0
    %405 = vmatpush.bf16.msra.mxu0 0
    %406 = vmatpush.bf16.msra.mxu0 0
    %407 = vmatpush.bf16.msra.mxu0 0
    %408 = vmatpush.bf16.msra.mxu0 0
    %409 = vmatpush.bf16.msra.mxu0 0
    %410 = vmatpush.bf16.msra.mxu0 %v250
    %411 = vmatpush.bf16.msra.mxu0 %v248
    %412 = vmatmul.bf16.gmra.mxu0 %v389
    %v413 = vpop.f32.mrf.mxu0
    %v414 = vadd.f32 0.0, %v413
    %v415 = vpop.f32.mrf.mxu0
    %416 = vdwg.mxu0
    %v417 = vadd.f32 %v414, %v341
    %v418 = vadd.f32 %v417, %v160
    %v419 = vxor.u32 %v418, 2147483648
    %v420 = vmul.f32 %v419, 1.442695
    %v421 = vpow.pop %v420
    %v422 = vadd.f32 %v421, 1.0
    %v423 = vrcp.pop %v422
    %v424 = vmul.f32 %v422, %v423
    %v425 = vsub.f32 1.0, %v424
    %v426 = vmul.f32 %v423, %v425
    %v427 = vadd.f32 %v423, %v426
    %vm428 = vweird.f32 %v422
    %vm429 = vweird.f32 %v423
    %vm430 = vmor %vm428, %vm429
    %v431 = vsel %vm430, %v423, %v427
    %v432 = vand.u32 2147483647, %v422
    %vm433 = vcmp.eq.f32.partialorder %v432, 8.507059e+37
    %v434 = vand.u32 %v422, 2147483648
    %v435 = vor.u32 1.1754944e-38, %v434
    %v436 = vsel %vm433, %v435, %v431
    %v437 = vmul.f32 1.0, %v436
    %v438 = vmul.f32 %v437, 2.0
    %v439 = vsub.f32 %v438, 1.0
    %v440 = vmul.f32 %v437, %v317
    %442 = vrot.lane.b32.xlu0 %v439, 64
    %v443 = vpop.permute.xlu0 %442
    %v445 = vmul.f32 %v437, %v443
    %447 = vrot.lane.b32.xlu0 %v445, 32
    %v448 = vpop.permute.xlu0 %447
    %v450 = vadd.f32 %v440, %v448
    %v451 = vtanh.pop %v450
    %453 = vrot.lane.b32.xlu0 %v451, 64
    %v454 = vpop.permute.xlu0 %453
    %v456 = vmul.f32 %v437, %v454
    %v457 = vpack.c.bf16 %v456, %v456
    %459 = vrot.lane.b32.xlu0 %v457, 32
    %v460 = vpop.permute.xlu0 %459
    %v462 = vsel %vm174, %v460, 0
    %464 = vmatpush.bf16.msra.mxu0 0
    %465 = vmatpush.bf16.msra.mxu0 0
    %466 = vmatpush.bf16.msra.mxu0 0
    %467 = vmatpush.bf16.msra.mxu0 0
    %468 = vmatpush.bf16.msra.mxu0 0
    %469 = vmatpush.bf16.msra.mxu0 0
    %470 = vmatpush.bf16.msra.mxu0 %v171
    %471 = vmatpush.bf16.msra.mxu0 %v170
    %472 = vmatmul.bf16.gmra.mxu0 %v462
    %v473 = vpop.f32.mrf.mxu0
    %v474 = vadd.f32 0.0, %v473
    %v475 = vpop.f32.mrf.mxu0
    %476 = vdwg.mxu0
    %v477 = vld [vmem:[#allocation2 + $0x10] sm:$0xff]
    %v478 = vadd.f32 %v477, %v401
    %v479 = vxor.u32 %v478, 2147483648
    %v480 = vmul.f32 %v479, 1.442695
    %v481 = vpow.pop %v480
    %v482 = vadd.f32 %v481, 1.0
    %v483 = vrcp.pop %v482
    %v484 = vmul.f32 %v482, %v483
    %v485 = vsub.f32 1.0, %v484
    %v486 = vmul.f32 %v483, %v485
    %v487 = vadd.f32 %v483, %v486
    %vm488 = vweird.f32 %v482
    %vm489 = vweird.f32 %v483
    %vm490 = vmor %vm488, %vm489
    %v491 = vsel %vm490, %v483, %v487
    %v492 = vand.u32 2147483647, %v482
    %vm493 = vcmp.eq.f32.partialorder %v492, 8.507059e+37
    %v494 = vand.u32 %v482, 2147483648
    %v495 = vor.u32 1.1754944e-38, %v494
    %v496 = vsel %vm493, %v495, %v491
    %v497 = vmul.f32 1.0, %v496
    %v498 = vmul.f32 %v497, 2.0
    %v499 = vsub.f32 %v498, 1.0
    %v500 = vmul.f32 %v497, %v377
    %502 = vrot.lane.b32.xlu0 %v499, 64
    %v503 = vpop.permute.xlu0 %502
    %v505 = vmul.f32 %v497, %v503
    %507 = vrot.lane.b32.xlu0 %v505, 32
    %v508 = vpop.permute.xlu0 %507
    %v510 = vadd.f32 %v500, %v508
    %v511 = vtanh.pop %v510
    %513 = vrot.lane.b32.xlu0 %v511, 64
    %v514 = vpop.permute.xlu0 %513
    %v516 = vmul.f32 %v497, %v514
    %v517 = vpack.c.bf16 %v516, %v516
    %519 = vrot.lane.b32.xlu0 %v517, 32
    %v520 = vpop.permute.xlu0 %519
    %v522 = vsel %vm174, %v520, 0
    %524 = vmatpush.bf16.msra.mxu0 0
    %525 = vmatpush.bf16.msra.mxu0 0
    %526 = vmatpush.bf16.msra.mxu0 0
    %527 = vmatpush.bf16.msra.mxu0 0
    %528 = vmatpush.bf16.msra.mxu0 0
    %529 = vmatpush.bf16.msra.mxu0 0
    %530 = vmatpush.bf16.msra.mxu0 %v249
    %531 = vmatpush.bf16.msra.mxu0 %v247
    %532 = vmatmul.bf16.gmra.mxu0 %v522
    %v533 = vpop.f32.mrf.mxu0
    %v534 = vadd.f32 0.0, %v533
    %v535 = vpop.f32.mrf.mxu0
    %536 = vdwg.mxu0
    %537 = vmatpush.bf16.msra.mxu0 0
    %538 = vmatpush.bf16.msra.mxu0 0
    %539 = vmatpush.bf16.msra.mxu0 0
    %540 = vmatpush.bf16.msra.mxu0 0
    %541 = vmatpush.bf16.msra.mxu0 0
    %542 = vmatpush.bf16.msra.mxu0 0
    %543 = vmatpush.bf16.msra.mxu0 %v250
    %544 = vmatpush.bf16.msra.mxu0 %v248
    %545 = vmatmul.bf16.gmra.mxu0 %v522
    %v546 = vpop.f32.mrf.mxu0
    %v547 = vadd.f32 0.0, %v546
    %v548 = vpop.f32.mrf.mxu0
    %549 = vdwg.mxu0
    %v550 = vadd.f32 %v547, %v474
    %v551 = vadd.f32 %v550, %v160
    %v552 = vxor.u32 %v551, 2147483648
    %v553 = vmul.f32 %v552, 1.442695
    %v554 = vpow.pop %v553
    %v555 = vadd.f32 %v554, 1.0
    %v556 = vrcp.pop %v555
    %v557 = vmul.f32 %v555, %v556
    %v558 = vsub.f32 1.0, %v557
    %v559 = vmul.f32 %v556, %v558
    %v560 = vadd.f32 %v556, %v559
    %vm561 = vweird.f32 %v555
    %vm562 = vweird.f32 %v556
    %vm563 = vmor %vm561, %vm562
    %v564 = vsel %vm563, %v556, %v560
    %v565 = vand.u32 2147483647, %v555
    %vm566 = vcmp.eq.f32.partialorder %v565, 8.507059e+37
    %v567 = vand.u32 %v555, 2147483648
    %v568 = vor.u32 1.1754944e-38, %v567
    %v569 = vsel %vm566, %v568, %v564
    %v570 = vmul.f32 1.0, %v569
    %v571 = vmul.f32 %v570, 2.0
    %v572 = vsub.f32 %v571, 1.0
    %v573 = vmul.f32 %v570, %v450
    %575 = vrot.lane.b32.xlu0 %v572, 64
    %v576 = vpop.permute.xlu0 %575
    %v578 = vmul.f32 %v570, %v576
    %580 = vrot.lane.b32.xlu0 %v578, 32
    %v581 = vpop.permute.xlu0 %580
    %v583 = vadd.f32 %v573, %v581
    %v584 = vtanh.pop %v583
    %586 = vrot.lane.b32.xlu0 %v584, 64
    %v587 = vpop.permute.xlu0 %586
    %v589 = vmul.f32 %v570, %v587
    %v590 = vpack.c.bf16 %v589, %v589
    %592 = vrot.lane.b32.xlu0 %v590, 32
    %v593 = vpop.permute.xlu0 %592
    %v595 = vsel %vm174, %v593, 0
    %597 = vmatpush.bf16.msra.mxu0 0
    %598 = vmatpush.bf16.msra.mxu0 0
    %599 = vmatpush.bf16.msra.mxu0 0
    %600 = vmatpush.bf16.msra.mxu0 0
    %601 = vmatpush.bf16.msra.mxu0 0
    %602 = vmatpush.bf16.msra.mxu0 0
    %603 = vmatpush.bf16.msra.mxu0 %v171
    %604 = vmatpush.bf16.msra.mxu0 %v170
    %605 = vmatmul.bf16.gmra.mxu0 %v595
    %v606 = vpop.f32.mrf.mxu0
    %v607 = vadd.f32 0.0, %v606
    %v608 = vpop.f32.mrf.mxu0
    %609 = vdwg.mxu0
    %v610 = vld [vmem:[#allocation2 + $0x18] sm:$0xff]
    %v611 = vadd.f32 %v610, %v534
    %v612 = vxor.u32 %v611, 2147483648
    %v613 = vmul.f32 %v612, 1.442695
    %v614 = vpow.pop %v613
    %v615 = vadd.f32 %v614, 1.0
    %v616 = vrcp.pop %v615
    %v617 = vmul.f32 %v615, %v616
    %v618 = vsub.f32 1.0, %v617
    %v619 = vmul.f32 %v616, %v618
    %v620 = vadd.f32 %v616, %v619
    %vm621 = vweird.f32 %v615
    %vm622 = vweird.f32 %v616
    %vm623 = vmor %vm621, %vm622
    %v624 = vsel %vm623, %v616, %v620
    %v625 = vand.u32 2147483647, %v615
    %vm626 = vcmp.eq.f32.partialorder %v625, 8.507059e+37
    %v627 = vand.u32 %v615, 2147483648
    %v628 = vor.u32 1.1754944e-38, %v627
    %v629 = vsel %vm626, %v628, %v624
    %v630 = vmul.f32 1.0, %v629
    %v631 = vmul.f32 %v630, 2.0
    %v632 = vsub.f32 %v631, 1.0
    %v633 = vmul.f32 %v630, %v510
    %635 = vrot.lane.b32.xlu0 %v632, 64
    %v636 = vpop.permute.xlu0 %635
    %v638 = vmul.f32 %v630, %v636
    %640 = vrot.lane.b32.xlu0 %v638, 32
    %v641 = vpop.permute.xlu0 %640
    %v643 = vadd.f32 %v633, %v641
    %v644 = vtanh.pop %v643
    %646 = vrot.lane.b32.xlu0 %v644, 64
    %v647 = vpop.permute.xlu0 %646
    %v649 = vmul.f32 %v630, %v647
    %v650 = vpack.c.bf16 %v649, %v649
    %652 = vrot.lane.b32.xlu0 %v650, 32
    %v653 = vpop.permute.xlu0 %652
    %v655 = vsel %vm174, %v653, 0
    %657 = vmatpush.bf16.msra.mxu0 0
    %658 = vmatpush.bf16.msra.mxu0 0
    %659 = vmatpush.bf16.msra.mxu0 0
    %660 = vmatpush.bf16.msra.mxu0 0
    %661 = vmatpush.bf16.msra.mxu0 0
    %662 = vmatpush.bf16.msra.mxu0 0
    %663 = vmatpush.bf16.msra.mxu0 %v249
    %664 = vmatpush.bf16.msra.mxu0 %v247
    %665 = vmatmul.bf16.gmra.mxu0 %v655
    %v666 = vpop.f32.mrf.mxu0
    %v667 = vadd.f32 0.0, %v666
    %v668 = vpop.f32.mrf.mxu0
    %669 = vdwg.mxu0
    %670 = vmatpush.bf16.msra.mxu0 0
    %671 = vmatpush.bf16.msra.mxu0 0
    %672 = vmatpush.bf16.msra.mxu0 0
    %673 = vmatpush.bf16.msra.mxu0 0
    %674 = vmatpush.bf16.msra.mxu0 0
    %675 = vmatpush.bf16.msra.mxu0 0
    %676 = vmatpush.bf16.msra.mxu0 %v250
    %677 = vmatpush.bf16.msra.mxu0 %v248
    %678 = vmatmul.bf16.gmra.mxu0 %v655
    %v679 = vpop.f32.mrf.mxu0
    %v680 = vadd.f32 0.0, %v679
    %v681 = vpop.f32.mrf.mxu0
    %682 = vdwg.mxu0
    %v683 = vadd.f32 %v680, %v607
    %v684 = vadd.f32 %v683, %v160
    %v685 = vxor.u32 %v684, 2147483648
    %v686 = vmul.f32 %v685, 1.442695
    %v687 = vpow.pop %v686
    %v688 = vadd.f32 %v687, 1.0
    %v689 = vrcp.pop %v688
    %v690 = vmul.f32 %v688, %v689
    %v691 = vsub.f32 1.0, %v690
    %v692 = vmul.f32 %v689, %v691
    %v693 = vadd.f32 %v689, %v692
    %vm694 = vweird.f32 %v688
    %vm695 = vweird.f32 %v689
    %vm696 = vmor %vm694, %vm695
    %v697 = vsel %vm696, %v689, %v693
    %v698 = vand.u32 2147483647, %v688
    %vm699 = vcmp.eq.f32.partialorder %v698, 8.507059e+37
    %v700 = vand.u32 %v688, 2147483648
    %v701 = vor.u32 1.1754944e-38, %v700
    %v702 = vsel %vm699, %v701, %v697
    %v703 = vmul.f32 1.0, %v702
    %v704 = vmul.f32 %v703, 2.0
    %v705 = vsub.f32 %v704, 1.0
    %v706 = vmul.f32 %v703, %v583
    %708 = vrot.lane.b32.xlu0 %v705, 64
    %v709 = vpop.permute.xlu0 %708
    %v711 = vmul.f32 %v703, %v709
    %713 = vrot.lane.b32.xlu0 %v711, 32
    %v714 = vpop.permute.xlu0 %713
    %v716 = vadd.f32 %v706, %v714
    %v717 = vtanh.pop %v716
    %719 = vrot.lane.b32.xlu0 %v717, 64
    %v720 = vpop.permute.xlu0 %719
    %v722 = vmul.f32 %v703, %v720
    %v723 = vpack.c.bf16 %v722, %v722
    %725 = vrot.lane.b32.xlu0 %v723, 32
    %v726 = vpop.permute.xlu0 %725
    %v728 = vsel %vm174, %v726, 0
    %730 = vmatpush.bf16.msra.mxu0 0
    %731 = vmatpush.bf16.msra.mxu0 0
    %732 = vmatpush.bf16.msra.mxu0 0
    %733 = vmatpush.bf16.msra.mxu0 0
    %734 = vmatpush.bf16.msra.mxu0 0
    %735 = vmatpush.bf16.msra.mxu0 0
    %736 = vmatpush.bf16.msra.mxu0 %v171
    %737 = vmatpush.bf16.msra.mxu0 %v170
    %738 = vmatmul.bf16.gmra.mxu0 %v728
    %v739 = vpop.f32.mrf.mxu0
    %v740 = vadd.f32 0.0, %v739
    %v741 = vpop.f32.mrf.mxu0
    %742 = vdwg.mxu0
    %v743 = vld [vmem:[#allocation2 + $0x20] sm:$0xff]
    %v744 = vadd.f32 %v743, %v667
    %v745 = vxor.u32 %v744, 2147483648
    %v746 = vmul.f32 %v745, 1.442695
    %v747 = vpow.pop %v746
    %v748 = vadd.f32 %v747, 1.0
    %v749 = vrcp.pop %v748
    %v750 = vmul.f32 %v748, %v749
    %v751 = vsub.f32 1.0, %v750
    %v752 = vmul.f32 %v749, %v751
    %v753 = vadd.f32 %v749, %v752
    %vm754 = vweird.f32 %v748
    %vm755 = vweird.f32 %v749
    %vm756 = vmor %vm754, %vm755
    %v757 = vsel %vm756, %v749, %v753
    %v758 = vand.u32 2147483647, %v748
    %vm759 = vcmp.eq.f32.partialorder %v758, 8.507059e+37
    %v760 = vand.u32 %v748, 2147483648
    %v761 = vor.u32 1.1754944e-38, %v760
    %v762 = vsel %vm759, %v761, %v757
    %v763 = vmul.f32 1.0, %v762
    %v764 = vmul.f32 %v763, 2.0
    %v765 = vsub.f32 %v764, 1.0
    %v766 = vmul.f32 %v763, %v643
    %768 = vrot.lane.b32.xlu0 %v765, 64
    %v769 = vpop.permute.xlu0 %768
    %v771 = vmul.f32 %v763, %v769
    %773 = vrot.lane.b32.xlu0 %v771, 32
    %v774 = vpop.permute.xlu0 %773
    %v776 = vadd.f32 %v766, %v774
    %v777 = vtanh.pop %v776
    %779 = vrot.lane.b32.xlu0 %v777, 64
    %v780 = vpop.permute.xlu0 %779
    %v782 = vmul.f32 %v763, %v780
    %v783 = vpack.c.bf16 %v782, %v782
    %785 = vrot.lane.b32.xlu0 %v783, 32
    %v786 = vpop.permute.xlu0 %785
    %v788 = vsel %vm174, %v786, 0
    %790 = vmatpush.bf16.msra.mxu0 0
    %791 = vmatpush.bf16.msra.mxu0 0
    %792 = vmatpush.bf16.msra.mxu0 0
    %793 = vmatpush.bf16.msra.mxu0 0
    %794 = vmatpush.bf16.msra.mxu0 0
    %795 = vmatpush.bf16.msra.mxu0 0
    %796 = vmatpush.bf16.msra.mxu0 %v249
    %797 = vmatpush.bf16.msra.mxu0 %v247
    %798 = vmatmul.bf16.gmra.mxu0 %v788
    %v799 = vpop.f32.mrf.mxu0
    %v800 = vadd.f32 0.0, %v799
    %v801 = vpop.f32.mrf.mxu0
    %802 = vdwg.mxu0
    %803 = vmatpush.bf16.msra.mxu0 0
    %804 = vmatpush.bf16.msra.mxu0 0
    %805 = vmatpush.bf16.msra.mxu0 0
    %806 = vmatpush.bf16.msra.mxu0 0
    %807 = vmatpush.bf16.msra.mxu0 0
    %808 = vmatpush.bf16.msra.mxu0 0
    %809 = vmatpush.bf16.msra.mxu0 %v250
    %810 = vmatpush.bf16.msra.mxu0 %v248
    %811 = vmatmul.bf16.gmra.mxu0 %v788
    %v812 = vpop.f32.mrf.mxu0
    %v813 = vadd.f32 0.0, %v812
    %v814 = vpop.f32.mrf.mxu0
    %815 = vdwg.mxu0
    %v816 = vadd.f32 %v813, %v740
    %v817 = vadd.f32 %v816, %v160
    %v818 = vxor.u32 %v817, 2147483648
    %v819 = vmul.f32 %v818, 1.442695
    %v820 = vpow.pop %v819
    %v821 = vadd.f32 %v820, 1.0
    %v822 = vrcp.pop %v821
    %v823 = vmul.f32 %v821, %v822
    %v824 = vsub.f32 1.0, %v823
    %v825 = vmul.f32 %v822, %v824
    %v826 = vadd.f32 %v822, %v825
    %vm827 = vweird.f32 %v821
    %vm828 = vweird.f32 %v822
    %vm829 = vmor %vm827, %vm828
    %v830 = vsel %vm829, %v822, %v826
    %v831 = vand.u32 2147483647, %v821
    %vm832 = vcmp.eq.f32.partialorder %v831, 8.507059e+37
    %v833 = vand.u32 %v821, 2147483648
    %v834 = vor.u32 1.1754944e-38, %v833
    %v835 = vsel %vm832, %v834, %v830
    %v836 = vmul.f32 1.0, %v835
    %v837 = vmul.f32 %v836, 2.0
    %v838 = vsub.f32 %v837, 1.0
    %v839 = vmul.f32 %v836, %v716
    %841 = vrot.lane.b32.xlu0 %v838, 64
    %v842 = vpop.permute.xlu0 %841
    %v844 = vmul.f32 %v836, %v842
    %846 = vrot.lane.b32.xlu0 %v844, 32
    %v847 = vpop.permute.xlu0 %846
    %v849 = vadd.f32 %v839, %v847
    %v850 = vtanh.pop %v849
    %852 = vrot.lane.b32.xlu0 %v850, 64
    %v853 = vpop.permute.xlu0 %852
    %v855 = vmul.f32 %v836, %v853
    %v856 = vpack.c.bf16 %v855, %v855
    %858 = vrot.lane.b32.xlu0 %v856, 32
    %v859 = vpop.permute.xlu0 %858
    %v861 = vsel %vm174, %v859, 0
    %863 = vmatpush.bf16.msra.mxu0 0
    %864 = vmatpush.bf16.msra.mxu0 0
    %865 = vmatpush.bf16.msra.mxu0 0
    %866 = vmatpush.bf16.msra.mxu0 0
    %867 = vmatpush.bf16.msra.mxu0 0
    %868 = vmatpush.bf16.msra.mxu0 0
    %869 = vmatpush.bf16.msra.mxu0 %v171
    %870 = vmatpush.bf16.msra.mxu0 %v170
    %871 = vmatmul.bf16.gmra.mxu0 %v861
    %v872 = vpop.f32.mrf.mxu0
    %v873 = vadd.f32 0.0, %v872
    %v874 = vpop.f32.mrf.mxu0
    %875 = vdwg.mxu0
    %v876 = vld [vmem:[#allocation2 + $0x28] sm:$0xff]
    %v877 = vadd.f32 %v876, %v800
    %v878 = vxor.u32 %v877, 2147483648
    %v879 = vmul.f32 %v878, 1.442695
    %v880 = vpow.pop %v879
    %v881 = vadd.f32 %v880, 1.0
    %v882 = vrcp.pop %v881
    %v883 = vmul.f32 %v881, %v882
    %v884 = vsub.f32 1.0, %v883
    %v885 = vmul.f32 %v882, %v884
    %v886 = vadd.f32 %v882, %v885
    %vm887 = vweird.f32 %v881
    %vm888 = vweird.f32 %v882
    %vm889 = vmor %vm887, %vm888
    %v890 = vsel %vm889, %v882, %v886
    %v891 = vand.u32 2147483647, %v881
    %vm892 = vcmp.eq.f32.partialorder %v891, 8.507059e+37
    %v893 = vand.u32 %v881, 2147483648
    %v894 = vor.u32 1.1754944e-38, %v893
    %v895 = vsel %vm892, %v894, %v890
    %v896 = vmul.f32 1.0, %v895
    %v897 = vmul.f32 %v896, 2.0
    %v898 = vsub.f32 %v897, 1.0
    %v899 = vmul.f32 %v896, %v776
    %901 = vrot.lane.b32.xlu0 %v898, 64
    %v902 = vpop.permute.xlu0 %901
    %v904 = vmul.f32 %v896, %v902
    %906 = vrot.lane.b32.xlu0 %v904, 32
    %v907 = vpop.permute.xlu0 %906
    %v909 = vadd.f32 %v899, %v907
    %v910 = vtanh.pop %v909
    %912 = vrot.lane.b32.xlu0 %v910, 64
    %v913 = vpop.permute.xlu0 %912
    %v915 = vmul.f32 %v896, %v913
    %v916 = vpack.c.bf16 %v915, %v915
    %918 = vrot.lane.b32.xlu0 %v916, 32
    %v919 = vpop.permute.xlu0 %918
    %v921 = vsel %vm174, %v919, 0
    %923 = vmatpush.bf16.msra.mxu0 0
    %924 = vmatpush.bf16.msra.mxu0 0
    %925 = vmatpush.bf16.msra.mxu0 0
    %926 = vmatpush.bf16.msra.mxu0 0
    %927 = vmatpush.bf16.msra.mxu0 0
    %928 = vmatpush.bf16.msra.mxu0 0
    %929 = vmatpush.bf16.msra.mxu0 %v249
    %930 = vmatpush.bf16.msra.mxu0 %v247
    %931 = vmatmul.bf16.gmra.mxu0 %v921
    %v932 = vpop.f32.mrf.mxu0
    %v933 = vadd.f32 0.0, %v932
    %v934 = vpop.f32.mrf.mxu0
    %935 = vdwg.mxu0
    %936 = vmatpush.bf16.msra.mxu0 0
    %937 = vmatpush.bf16.msra.mxu0 0
    %938 = vmatpush.bf16.msra.mxu0 0
    %939 = vmatpush.bf16.msra.mxu0 0
    %940 = vmatpush.bf16.msra.mxu0 0
    %941 = vmatpush.bf16.msra.mxu0 0
    %942 = vmatpush.bf16.msra.mxu0 %v250
    %943 = vmatpush.bf16.msra.mxu0 %v248
    %944 = vmatmul.bf16.gmra.mxu0 %v921
    %v945 = vpop.f32.mrf.mxu0
    %v946 = vadd.f32 0.0, %v945
    %v947 = vpop.f32.mrf.mxu0
    %948 = vdwg.mxu0
    %v949 = vadd.f32 %v946, %v873
    %v950 = vadd.f32 %v949, %v160
    %v951 = vxor.u32 %v950, 2147483648
    %v952 = vmul.f32 %v951, 1.442695
    %v953 = vpow.pop %v952
    %v954 = vadd.f32 %v953, 1.0
    %v955 = vrcp.pop %v954
    %v956 = vmul.f32 %v954, %v955
    %v957 = vsub.f32 1.0, %v956
    %v958 = vmul.f32 %v955, %v957
    %v959 = vadd.f32 %v955, %v958
    %vm960 = vweird.f32 %v954
    %vm961 = vweird.f32 %v955
    %vm962 = vmor %vm960, %vm961
    %v963 = vsel %vm962, %v955, %v959
    %v964 = vand.u32 2147483647, %v954
    %vm965 = vcmp.eq.f32.partialorder %v964, 8.507059e+37
    %v966 = vand.u32 %v954, 2147483648
    %v967 = vor.u32 1.1754944e-38, %v966
    %v968 = vsel %vm965, %v967, %v963
    %v969 = vmul.f32 1.0, %v968
    %v970 = vmul.f32 %v969, 2.0
    %v971 = vsub.f32 %v970, 1.0
    %v972 = vmul.f32 %v969, %v849
    %974 = vrot.lane.b32.xlu0 %v971, 64
    %v975 = vpop.permute.xlu0 %974
    %v977 = vmul.f32 %v969, %v975
    %979 = vrot.lane.b32.xlu0 %v977, 32
    %v980 = vpop.permute.xlu0 %979
    %v982 = vadd.f32 %v972, %v980
    %v983 = vtanh.pop %v982
    %985 = vrot.lane.b32.xlu0 %v983, 64
    %v986 = vpop.permute.xlu0 %985
    %v988 = vmul.f32 %v969, %v986
    %v989 = vpack.c.bf16 %v988, %v988
    %991 = vrot.lane.b32.xlu0 %v989, 32
    %v992 = vpop.permute.xlu0 %991
    %v994 = vsel %vm174, %v992, 0
    %996 = vmatpush.bf16.msra.mxu0 0
    %997 = vmatpush.bf16.msra.mxu0 0
    %998 = vmatpush.bf16.msra.mxu0 0
    %999 = vmatpush.bf16.msra.mxu0 0
    %1000 = vmatpush.bf16.msra.mxu0 0
    %1001 = vmatpush.bf16.msra.mxu0 0
    %1002 = vmatpush.bf16.msra.mxu0 %v171
    %1003 = vmatpush.bf16.msra.mxu0 %v170
    %1004 = vmatmul.bf16.gmra.mxu0 %v994
    %v1005 = vpop.f32.mrf.mxu0
    %v1006 = vadd.f32 0.0, %v1005
    %v1007 = vpop.f32.mrf.mxu0
    %1008 = vdwg.mxu0
    %v1009 = vld [vmem:[#allocation2 + $0x30] sm:$0xff]
    %v1010 = vadd.f32 %v1009, %v933
    %v1011 = vxor.u32 %v1010, 2147483648
    %v1012 = vmul.f32 %v1011, 1.442695
    %v1013 = vpow.pop %v1012
    %v1014 = vadd.f32 %v1013, 1.0
    %v1015 = vrcp.pop %v1014
    %v1016 = vmul.f32 %v1014, %v1015
    %v1017 = vsub.f32 1.0, %v1016
    %v1018 = vmul.f32 %v1015, %v1017
    %v1019 = vadd.f32 %v1015, %v1018
    %vm1020 = vweird.f32 %v1014
    %vm1021 = vweird.f32 %v1015
    %vm1022 = vmor %vm1020, %vm1021
    %v1023 = vsel %vm1022, %v1015, %v1019
    %v1024 = vand.u32 2147483647, %v1014
    %vm1025 = vcmp.eq.f32.partialorder %v1024, 8.507059e+37
    %v1026 = vand.u32 %v1014, 2147483648
    %v1027 = vor.u32 1.1754944e-38, %v1026
    %v1028 = vsel %vm1025, %v1027, %v1023
    %v1029 = vmul.f32 1.0, %v1028
    %v1030 = vmul.f32 %v1029, 2.0
    %v1031 = vsub.f32 %v1030, 1.0
    %v1032 = vmul.f32 %v1029, %v909
    %1034 = vrot.lane.b32.xlu0 %v1031, 64
    %v1035 = vpop.permute.xlu0 %1034
    %v1037 = vmul.f32 %v1029, %v1035
    %1039 = vrot.lane.b32.xlu0 %v1037, 32
    %v1040 = vpop.permute.xlu0 %1039
    %v1042 = vadd.f32 %v1032, %v1040
    %v1043 = vtanh.pop %v1042
    %1045 = vrot.lane.b32.xlu0 %v1043, 64
    %v1046 = vpop.permute.xlu0 %1045
    %v1048 = vmul.f32 %v1029, %v1046
    %v1049 = vpack.c.bf16 %v1048, %v1048
    %1051 = vrot.lane.b32.xlu0 %v1049, 32
    %v1052 = vpop.permute.xlu0 %1051
    %v1054 = vsel %vm174, %v1052, 0
    %1056 = vmatpush.bf16.msra.mxu0 0
    %1057 = vmatpush.bf16.msra.mxu0 0
    %1058 = vmatpush.bf16.msra.mxu0 0
    %1059 = vmatpush.bf16.msra.mxu0 0
    %1060 = vmatpush.bf16.msra.mxu0 0
    %1061 = vmatpush.bf16.msra.mxu0 0
    %1062 = vmatpush.bf16.msra.mxu0 %v249
    %1063 = vmatpush.bf16.msra.mxu0 %v247
    %1064 = vmatmul.bf16.gmra.mxu0 %v1054
    %v1065 = vpop.f32.mrf.mxu0
    %v1066 = vadd.f32 0.0, %v1065
    %v1067 = vpop.f32.mrf.mxu0
    %1068 = vdwg.mxu0
    %1069 = vmatpush.bf16.msra.mxu0 0
    %1070 = vmatpush.bf16.msra.mxu0 0
    %1071 = vmatpush.bf16.msra.mxu0 0
    %1072 = vmatpush.bf16.msra.mxu0 0
    %1073 = vmatpush.bf16.msra.mxu0 0
    %1074 = vmatpush.bf16.msra.mxu0 0
    %1075 = vmatpush.bf16.msra.mxu0 %v250
    %1076 = vmatpush.bf16.msra.mxu0 %v248
    %1077 = vmatmul.bf16.gmra.mxu0 %v1054
    %v1078 = vpop.f32.mrf.mxu0
    %v1079 = vadd.f32 0.0, %v1078
    %v1080 = vpop.f32.mrf.mxu0
    %1081 = vdwg.mxu0
    %v1082 = vadd.f32 %v1079, %v1006
    %v1083 = vadd.f32 %v1082, %v160
    %v1084 = vxor.u32 %v1083, 2147483648
    %v1085 = vmul.f32 %v1084, 1.442695
    %v1086 = vpow.pop %v1085
    %v1087 = vadd.f32 %v1086, 1.0
    %v1088 = vrcp.pop %v1087
    %v1089 = vmul.f32 %v1087, %v1088
    %v1090 = vsub.f32 1.0, %v1089
    %v1091 = vmul.f32 %v1088, %v1090
    %v1092 = vadd.f32 %v1088, %v1091
    %vm1093 = vweird.f32 %v1087
    %vm1094 = vweird.f32 %v1088
    %vm1095 = vmor %vm1093, %vm1094
    %v1096 = vsel %vm1095, %v1088, %v1092
    %v1097 = vand.u32 2147483647, %v1087
    %vm1098 = vcmp.eq.f32.partialorder %v1097, 8.507059e+37
    %v1099 = vand.u32 %v1087, 2147483648
    %v1100 = vor.u32 1.1754944e-38, %v1099
    %v1101 = vsel %vm1098, %v1100, %v1096
    %v1102 = vmul.f32 1.0, %v1101
    %v1103 = vmul.f32 %v1102, 2.0
    %v1104 = vsub.f32 %v1103, 1.0
    %v1105 = vmul.f32 %v1102, %v982
    %1107 = vrot.lane.b32.xlu0 %v1104, 64
    %v1108 = vpop.permute.xlu0 %1107
    %v1110 = vmul.f32 %v1102, %v1108
    %1112 = vrot.lane.b32.xlu0 %v1110, 32
    %v1113 = vpop.permute.xlu0 %1112
    %v1115 = vadd.f32 %v1105, %v1113
    %v1116 = vtanh.pop %v1115
    %1118 = vrot.lane.b32.xlu0 %v1116, 64
    %v1119 = vpop.permute.xlu0 %1118
    %v1121 = vmul.f32 %v1102, %v1119
    %v1122 = vpack.c.bf16 %v1121, %v1121
    %1124 = vrot.lane.b32.xlu0 %v1122, 32
    %v1125 = vpop.permute.xlu0 %1124
    %v1127 = vsel %vm174, %v1125, 0
    %1129 = vmatpush.bf16.msra.mxu0 0
    %1130 = vmatpush.bf16.msra.mxu0 0
    %1131 = vmatpush.bf16.msra.mxu0 0
    %1132 = vmatpush.bf16.msra.mxu0 0
    %1133 = vmatpush.bf16.msra.mxu0 0
    %1134 = vmatpush.bf16.msra.mxu0 0
    %1135 = vmatpush.bf16.msra.mxu0 %v171
    %1136 = vmatpush.bf16.msra.mxu0 %v170
    %1137 = vmatmul.bf16.gmra.mxu0 %v1127
    %v1138 = vpop.f32.mrf.mxu0
    %v1139 = vadd.f32 0.0, %v1138
    %v1140 = vpop.f32.mrf.mxu0
    %1141 = vdwg.mxu0
    %v1142 = vld [vmem:[#allocation2 + $0x38] sm:$0xff]
    %v1143 = vadd.f32 %v1142, %v1066
    %v1144 = vxor.u32 %v1143, 2147483648
    %v1145 = vmul.f32 %v1144, 1.442695
    %v1146 = vpow.pop %v1145
    %v1147 = vadd.f32 %v1146, 1.0
    %v1148 = vrcp.pop %v1147
    %v1149 = vmul.f32 %v1147, %v1148
    %v1150 = vsub.f32 1.0, %v1149
    %v1151 = vmul.f32 %v1148, %v1150
    %v1152 = vadd.f32 %v1148, %v1151
    %vm1153 = vweird.f32 %v1147
    %vm1154 = vweird.f32 %v1148
    %vm1155 = vmor %vm1153, %vm1154
    %v1156 = vsel %vm1155, %v1148, %v1152
    %v1157 = vand.u32 2147483647, %v1147
    %vm1158 = vcmp.eq.f32.partialorder %v1157, 8.507059e+37
    %v1159 = vand.u32 %v1147, 2147483648
    %v1160 = vor.u32 1.1754944e-38, %v1159
    %v1161 = vsel %vm1158, %v1160, %v1156
    %v1162 = vmul.f32 1.0, %v1161
    %v1163 = vmul.f32 %v1162, 2.0
    %v1164 = vsub.f32 %v1163, 1.0
    %v1165 = vmul.f32 %v1162, %v1042
    %1167 = vrot.lane.b32.xlu0 %v1164, 64
    %v1168 = vpop.permute.xlu0 %1167
    %v1170 = vmul.f32 %v1162, %v1168
    %1172 = vrot.lane.b32.xlu0 %v1170, 32
    %v1173 = vpop.permute.xlu0 %1172
    %v1175 = vadd.f32 %v1165, %v1173
    %v1176 = vtanh.pop %v1175
    %1178 = vrot.lane.b32.xlu0 %v1176, 64
    %v1179 = vpop.permute.xlu0 %1178
    %v1181 = vmul.f32 %v1162, %v1179
    %v1182 = vpack.c.bf16 %v1181, %v1181
    %1184 = vrot.lane.b32.xlu0 %v1182, 32
    %v1185 = vpop.permute.xlu0 %1184
    %v1187 = vsel %vm174, %v1185, 0
    %1189 = vmatpush.bf16.msra.mxu0 0
    %1190 = vmatpush.bf16.msra.mxu0 0
    %1191 = vmatpush.bf16.msra.mxu0 0
    %1192 = vmatpush.bf16.msra.mxu0 0
    %1193 = vmatpush.bf16.msra.mxu0 0
    %1194 = vmatpush.bf16.msra.mxu0 0
    %1195 = vmatpush.bf16.msra.mxu0 %v250
    %1196 = vmatpush.bf16.msra.mxu0 %v248
    %1197 = vmatmul.bf16.gmra.mxu0 %v1187
    %v1198 = vpop.f32.mrf.mxu0
    %v1199 = vadd.f32 0.0, %v1198
    %v1200 = vpop.f32.mrf.mxu0
    %1201 = vdwg.mxu0
    %v1202 = vadd.f32 %v1199, %v1139
    %v1203 = vadd.f32 %v1202, %v160
    %v1204 = vxor.u32 %v1203, 2147483648
    %v1205 = vmul.f32 %v1204, 1.442695
    %v1206 = vpow.pop %v1205
    %v1207 = vadd.f32 %v1206, 1.0
    %v1208 = vrcp.pop %v1207
    %v1209 = vmul.f32 %v1207, %v1208
    %v1210 = vsub.f32 1.0, %v1209
    %v1211 = vmul.f32 %v1208, %v1210
    %v1212 = vadd.f32 %v1208, %v1211
    %vm1213 = vweird.f32 %v1207
    %vm1214 = vweird.f32 %v1208
    %vm1215 = vmor %vm1213, %vm1214
    %v1216 = vsel %vm1215, %v1208, %v1212
    %v1217 = vand.u32 2147483647, %v1207
    %vm1218 = vcmp.eq.f32.partialorder %v1217, 8.507059e+37
    %v1219 = vand.u32 %v1207, 2147483648
    %v1220 = vor.u32 1.1754944e-38, %v1219
    %v1221 = vsel %vm1218, %v1220, %v1216
    %v1222 = vmul.f32 1.0, %v1221
    %v1223 = vmul.f32 %v1222, 2.0
    %v1224 = vsub.f32 %v1223, 1.0
    %v1225 = vmul.f32 %v1222, %v1115
    %1227 = vrot.lane.b32.xlu0 %v1224, 64
    %v1228 = vpop.permute.xlu0 %1227
    %v1230 = vmul.f32 %v1222, %v1228
    %1232 = vrot.lane.b32.xlu0 %v1230, 32
    %v1233 = vpop.permute.xlu0 %1232
    %v1235 = vadd.f32 %v1225, %v1233
    %v1236 = vtanh.pop %v1235
    %1238 = vrot.lane.b32.xlu0 %v1236, 64
    %v1239 = vpop.permute.xlu0 %1238
    %v1241 = vmul.f32 %v1222, %v1239
    %v1242 = vpack.c.bf16 %v1241, %v1241
    %v1243 = vld [vmem:[#allocation6] sm:$0xf]
    %v1244 = vld [vmem:[#allocation6 + $0x4] sm:$0xf]
    %v1245 = vld [vmem:[#allocation6 + $0x8] sm:$0xf]
    %v1246 = vld [vmem:[#allocation6 + $0xc] sm:$0xf]
    %v1247 = vld [vmem:[%s7] sm:$0x1]
    %v1249 = vperm.slane %v1247, 0
    %1252 = vrot.lane.b32.xlu0 %v1242, 32
    %v1253 = vpop.permute.xlu0 %1252
    %v1258 = vunpack.c.l.b16 %v1243
    %v1259 = vunpack.c.l.b16 %v1244
    %v1260 = vunpack.c.l.b16 %v1245
    %v1261 = vunpack.c.l.b16 %v1246
    %v1262 = vpack.c.b16 %v1259, %v1258
    %v1263 = vpack.c.b16 %v1261, %v1260
    %v1267 = vsel %vm174, %v1253, 0
    %1269 = vmatpush.bf16.msra.mxu0 0
    %1270 = vmatpush.bf16.msra.mxu0 0
    %1271 = vmatpush.bf16.msra.mxu0 0
    %1272 = vmatpush.bf16.msra.mxu0 0
    %1273 = vmatpush.bf16.msra.mxu0 0
    %1274 = vmatpush.bf16.msra.mxu0 0
    %1275 = vmatpush.bf16.msra.mxu0 %v1263
    %1276 = vmatpush.bf16.msra.mxu0 %v1262
    %1277 = vmatmul.bf16.gmra.mxu0 %v1267
    %v1278 = vpop.f32.mrf.mxu0
    %v1279 = vadd.f32 %v1249, %v1278
    %v1280 = vpop.f32.mrf.mxu0
    %1281 = vdwg.mxu0
    %1282 = vst [vmem:[#allocation8] sm:$0xff] %v1279
    // Predicated region
    $region42: #{tpu_custom_call.1} parent=1 // pred_check
      _
    $region43: #{tpu_custom_call.1} parent=1 // pred_check_branch
      %1284 = sbr.rel (0) target = $region45
    $region44: #{tpu_custom_call.1} parent=1 // pred_region
      %1286 = vsyncadd [#allocation5], 0
      %s1288 = sshll.u32 [#allocation8], 4
      %s1289 = int_to_ptr.vmem [resolvable:$true] %s1288
      %s1290 = sshll.u32 %s8, 4
      %s1291 = int_to_ptr.hbm [resolvable:$true] %s1290
      %1293 = dma.vmem_to_hbm [thread:$0]  %s1289, 128, %s1291, [#allocation5]
    $region45: #{tpu_custom_call.1} parent=1 // pred_fallthru
      _
    // Predicated region
    $region46: #{tpu_custom_call.1} parent=1 // pred_check
      _
    $region47: #{tpu_custom_call.1} parent=1 // pred_check_branch
      %1295 = sbr.rel (0) target = $region49
    $region48: #{tpu_custom_call.1} parent=1 // pred_region
      %1297 = dma.done [#allocation5], 128
    $region49: #{tpu_custom_call.1} parent=1 // pred_fallthru
      _
    %1298 = vsyncpa [#allocation4], 1
    %1299 = vsyncpa [#allocation7], 1
    %1300 = vsyncpa [#allocation5], 1

</llo_original>
